<compile_context>
chip_gen: v7x
topology: tpu7x:2x2x1
jax: 0.10.0
libtpu: 0.0.40
codegen_flags: <defaults>
</compile_context>

<pallas_src>
import functools
import math

import jax
import jax.numpy as jnp
from jax.experimental import pallas as pl
from jax.experimental.pallas import tpu as pltpu


def _round_up(x, m):
    return ((x + m - 1) // m) * m


def _tpu_config():
    """Per-generation MXU dtype, VMEM limit and batch tile."""
    kind = ""
    try:
        kind = jax.devices()[0].device_kind.lower()
    except Exception:
        pass
    is_v7 = ("v7" in kind) or ("tpu7" in kind)
    is_v6 = "v6" in kind
    is_v5 = "v5" in kind
    # bf16 MXU operands on v5e/v6e/v7x (accumulation stays f32, elementwise stays f32).
    mxu_dtype = jnp.bfloat16 if (is_v5 or is_v6 or is_v7) else jnp.float32
    if is_v7:
        vmem_limit = 40 * 1024 * 1024     # 64 MiB physical/TC: leave headroom
        tile_b = 64
    elif is_v5 or is_v6:
        vmem_limit = 96 * 1024 * 1024     # 128 MiB physical
        tile_b = 256
    else:
        vmem_limit = 32 * 1024 * 1024
        tile_b = 128
    return mxu_dtype, vmem_limit, tile_b


# ------------------------------ fused kernel --------------------------------

def _actor_fused_kernel(x_ref, wc1_ref, bc1_ref, wc2_ref, bc2_ref,
                        wfc_ref, bfc_ref, g_ref, beta_ref,
                        w1_ref, b1_ref, w2_ref, b2_ref, w3_ref, b3_ref,
                        mu_ref, ls_ref, *, log_std_min, log_std_max, pad_n):
    """Whole forward for one batch tile; every intermediate stays in VMEM."""

    def mm(a, w_ref):
        w = w_ref[...]
        return jnp.dot(a.astype(w.dtype), w, preferred_element_type=jnp.float32)

    x = x_ref[...]                                           # (tb, C*H*W), /255 folded in wc1
    # conv1 (stride 2, VALID) + ReLU, as a dense matmul
    h = jnp.maximum(mm(x, wc1_ref) + bc1_ref[...], 0.0)      # (tb, F*7*7)
    # conv2 (stride 1, VALID) + ReLU
    h = jnp.maximum(mm(h, wc2_ref) + bc2_ref[...], 0.0)      # (tb, F*5*5)
    # encoder fc -> LayerNorm(eps=1e-5) -> tanh
    h = mm(h, wfc_ref) + bfc_ref[...]                        # (tb, feature_dim)
    mean = jnp.mean(h, axis=-1, keepdims=True)
    var = jnp.mean(jnp.square(h - mean), axis=-1, keepdims=True)
    h = jnp.tanh((h - mean) * jax.lax.rsqrt(var + 1e-5) * g_ref[...] + beta_ref[...])
    # trunk: Linear -> ReLU -> Linear -> ReLU
    h = jnp.maximum(mm(h, w1_ref) + b1_ref[...], 0.0)
    h = jnp.maximum(mm(h, w2_ref) + b2_ref[...], 0.0)
    # single N=2*pad_n head matmul; 128-lane-aligned split = free views
    y = mm(h, w3_ref) + b3_ref[...]                          # (tb, 2*pad_n)
    mu_ref[...] = y[:, :pad_n]
    ls_ref[...] = jnp.clip(y[:, pad_n:], log_std_min, log_std_max)


def actor_forward(obs_nchw, params, action_dim, log_std_min=-10.0, log_std_max=2.0,
                  tile_b=128, vmem_limit=32 * 1024 * 1024):
    """goal_conditioned=False path of StochasticConvActor.forward."""
    B = obs_nchw.shape[0]
    x = obs_nchw.reshape(B, -1)                              # contiguous NCHW flatten (free)

    w_names = ("wc1", "bc1", "wc2", "bc2", "wfc", "bfc", "ln_g", "ln_b",
               "w1", "b1", "w2", "b2", "w3", "b3")
    ws = [params[k] for k in w_names]
    pad_n = params["w3"].shape[1] // 2

    tb = min(int(tile_b), _round_up(B, 8))
    grid = (pl.cdiv(B, tb),)                                 # no jnp.pad: ragged last block

    kern = functools.partial(_actor_fused_kernel,
                             log_std_min=float(log_std_min),
                             log_std_max=float(log_std_max),
                             pad_n=pad_n)

    mu_p, ls_p = pl.pallas_call(
        kern,
        out_shape=(jax.ShapeDtypeStruct((B, pad_n), jnp.float32),
                   jax.ShapeDtypeStruct((B, pad_n), jnp.float32)),
        grid=grid,
        in_specs=[pl.BlockSpec((tb, x.shape[1]), lambda i: (i, 0))]
                 + [pl.BlockSpec(w.shape, lambda i: (0, 0)) for w in ws],  # resident
        out_specs=(pl.BlockSpec((tb, pad_n), lambda i: (i, 0)),
                   pl.BlockSpec((tb, pad_n), lambda i: (i, 0))),
        compiler_params=pltpu.CompilerParams(
            dimension_semantics=("parallel",),
            vmem_limit_bytes=int(vmem_limit)),
    )(x, *ws)
    # tiny final slice (pad_n -> action_dim); everything else was lane-dense
    return mu_p[:, :action_dim], ls_p[:, :action_dim]


# --------------------------- deterministic init ------------------------------

def orthogonal(key, rows, cols, gain=1.0):
    """Mimics nn.init.orthogonal_ on a (rows, cols) matrix."""
    a = jax.random.normal(key, (rows, cols), dtype=jnp.float32)
    if rows < cols:
        a = a.T
    q, r = jnp.linalg.qr(a)
    q = q * jnp.sign(jnp.diagonal(r))
    if rows < cols:
        q = q.T
    return (gain * q).astype(jnp.float32)


def conv_to_dense(w_oihw, in_chw, stride):
    """Lower a VALID conv (PyTorch semantics) at a fixed input size to a dense
    (in_dim, out_dim) matrix with NCHW-flatten ordering on both sides."""
    C, H, W = in_chw
    eye = jnp.eye(C * H * W, dtype=jnp.float32).reshape(C * H * W, C, H, W)
    out = jax.lax.conv_general_dilated(
        eye, w_oihw, window_strides=(stride, stride), padding="VALID",
        dimension_numbers=("NCHW", "OIHW", "NCHW"))
    return out.reshape(C * H * W, -1)


def init_params(key, obs_chw, num_filters, feature_dim, hidden_dim, action_dim,
                mxu_dtype=jnp.float32, head_pad=128):
    C, H, W = obs_chw
    ks = jax.random.split(key, 6)
    relu_gain = math.sqrt(2.0)                 # nn.init.calculate_gain('relu')

    conv1 = orthogonal(ks[0], num_filters, C * 9, relu_gain).reshape(num_filters, C, 3, 3)
    oh1, ow1 = (H - 3) // 2 + 1, (W - 3) // 2 + 1
    conv2 = orthogonal(ks[1], num_filters, num_filters * 9,
                       relu_gain).reshape(num_filters, num_filters, 3, 3)
    oh2, ow2 = oh1 - 2, ow1 - 2
    flat_dim = num_filters * oh2 * ow2

    # conv layers as dense matrices; /255 preprocessing folded into conv1
    # (exact because conv1 bias is zero and conv is linear).
    wc1 = conv_to_dense(conv1, (C, H, W), stride=2) / 255.0
    wc2 = conv_to_dense(conv2, (num_filters, oh1, ow1), stride=1)

    fc_pt = orthogonal(ks[2], feature_dim, flat_dim, 1.0)        # (out, in), NCHW flatten
    w1_pt = orthogonal(ks[3], hidden_dim, feature_dim, 1.0)
    w2_pt = orthogonal(ks[4], hidden_dim, hidden_dim, 1.0)
    w3_pt = orthogonal(ks[5], 2 * action_dim, hidden_dim, 1.0)

    pad_n = _round_up(action_dim, head_pad)
    w3 = jnp.zeros((hidden_dim, 2 * pad_n), jnp.float32)
    w3 = w3.at[:, :action_dim].set(w3_pt[:action_dim].T)               # mu head
    w3 = w3.at[:, pad_n:pad_n + action_dim].set(w3_pt[action_dim:].T)  # log_std head

    f32 = jnp.float32
    return {
        "wc1": wc1.astype(mxu_dtype), "bc1": jnp.zeros((1, wc1.shape[1]), f32),
        "wc2": wc2.astype(mxu_dtype), "bc2": jnp.zeros((1, wc2.shape[1]), f32),
        "wfc": fc_pt.T.astype(mxu_dtype), "bfc": jnp.zeros((1, feature_dim), f32),
        "ln_g": jnp.ones((1, feature_dim), f32),
        "ln_b": jnp.zeros((1, feature_dim), f32),
        "w1": w1_pt.T.astype(mxu_dtype), "b1": jnp.zeros((1, hidden_dim), f32),
        "w2": w2_pt.T.astype(mxu_dtype), "b2": jnp.zeros((1, hidden_dim), f32),
        "w3": w3.astype(mxu_dtype), "b3": jnp.zeros((1, 2 * pad_n), f32),
    }


# ----------------------------------- main ------------------------------------

if __name__ == "__main__":
    B, C, H, W = 2, 4, 16, 16
    num_filters = 8
    feature_dim = 16
    hidden_dim = 32
    action_dim = 6

    MXU_DTYPE, VMEM_LIMIT, TILE_B = _tpu_config()

    key = jax.random.PRNGKey(0)
    k_obs, k_par = jax.random.split(key)
    obs = jax.random.uniform(k_obs, (B, C, H, W), jnp.float32, 0.0, 255.0)

    params = init_params(k_par, (C, H, W), num_filters, feature_dim, hidden_dim,
                         action_dim, mxu_dtype=MXU_DTYPE)

    fwd = jax.jit(functools.partial(actor_forward, action_dim=action_dim,
                                    tile_b=TILE_B, vmem_limit=VMEM_LIMIT))
    mu, log_std = fwd(obs, params)
    jax.block_until_ready((mu, log_std))

    assert mu.shape == (B, action_dim) and log_std.shape == (B, action_dim)
    assert bool(jnp.all(jnp.isfinite(mu))) and bool(jnp.all(jnp.isfinite(log_std)))
    assert bool(jnp.all(log_std >= -10.0)) and bool(jnp.all(log_std <= 2.0))
    print("KERNEL_OK")
</pallas_src>

<mosaic_0001>
module attributes {stable_mosaic.version = 11 : i64} {
  func.func @_actor_fused_kernel(%arg0: i32, %arg1: memref<8x1024xf32, #tpu.memory_space<vmem>>, %arg2: memref<1024x392xf32, #tpu.memory_space<vmem>>, %arg3: memref<1x392xf32, #tpu.memory_space<vmem>>, %arg4: memref<392x200xf32, #tpu.memory_space<vmem>>, %arg5: memref<1x200xf32, #tpu.memory_space<vmem>>, %arg6: memref<200x16xf32, #tpu.memory_space<vmem>>, %arg7: memref<1x16xf32, #tpu.memory_space<vmem>>, %arg8: memref<1x16xf32, #tpu.memory_space<vmem>>, %arg9: memref<1x16xf32, #tpu.memory_space<vmem>>, %arg10: memref<16x32xf32, #tpu.memory_space<vmem>>, %arg11: memref<1x32xf32, #tpu.memory_space<vmem>>, %arg12: memref<32x32xf32, #tpu.memory_space<vmem>>, %arg13: memref<1x32xf32, #tpu.memory_space<vmem>>, %arg14: memref<32x256xf32, #tpu.memory_space<vmem>>, %arg15: memref<1x256xf32, #tpu.memory_space<vmem>>, %arg16: memref<8x128xf32, #tpu.memory_space<vmem>>, %arg17: memref<8x128xf32, #tpu.memory_space<vmem>>) attributes {dimension_semantics = [#tpu.dimension_semantics<parallel>], iteration_bounds = array<i64: 1>, scalar_prefetch = 0 : i64, scratch_operands = 0 : i64, tpu.core_type = #tpu.core_type<tc>, window_params = [{transform_indices = @transform_0, window_bounds = array<i64: 8, 1024>}, {pipeline_mode = #tpu.pipeline_mode<synchronous>, transform_indices = @transform_1, window_bounds = array<i64: 1024, 392>}, {pipeline_mode = #tpu.pipeline_mode<synchronous>, transform_indices = @transform_2, window_bounds = array<i64: 1, 392>}, {pipeline_mode = #tpu.pipeline_mode<synchronous>, transform_indices = @transform_3, window_bounds = array<i64: 392, 200>}, {pipeline_mode = #tpu.pipeline_mode<synchronous>, transform_indices = @transform_4, window_bounds = array<i64: 1, 200>}, {pipeline_mode = #tpu.pipeline_mode<synchronous>, transform_indices = @transform_5, window_bounds = array<i64: 200, 16>}, {pipeline_mode = #tpu.pipeline_mode<synchronous>, transform_indices = @transform_6, window_bounds = array<i64: 1, 16>}, {pipeline_mode = #tpu.pipeline_mode<synchronous>, transform_indices = @transform_7, window_bounds = array<i64: 1, 16>}, {pipeline_mode = #tpu.pipeline_mode<synchronous>, transform_indices = @transform_8, window_bounds = array<i64: 1, 16>}, {pipeline_mode = #tpu.pipeline_mode<synchronous>, transform_indices = @transform_9, window_bounds = array<i64: 16, 32>}, {pipeline_mode = #tpu.pipeline_mode<synchronous>, transform_indices = @transform_10, window_bounds = array<i64: 1, 32>}, {pipeline_mode = #tpu.pipeline_mode<synchronous>, transform_indices = @transform_11, window_bounds = array<i64: 32, 32>}, {pipeline_mode = #tpu.pipeline_mode<synchronous>, transform_indices = @transform_12, window_bounds = array<i64: 1, 32>}, {pipeline_mode = #tpu.pipeline_mode<synchronous>, transform_indices = @transform_13, window_bounds = array<i64: 32, 256>}, {pipeline_mode = #tpu.pipeline_mode<synchronous>, transform_indices = @transform_14, window_bounds = array<i64: 1, 256>}, {transform_indices = @transform_15, window_bounds = array<i64: 8, 128>}, {transform_indices = @transform_16, window_bounds = array<i64: 8, 128>}]} {
    %c0 = arith.constant 0 : index
    %c0_0 = arith.constant 0 : index
    %0 = vector.load %arg1[%c0, %c0_0] : memref<8x1024xf32, #tpu.memory_space<vmem>>, vector<8x1024xf32>
    %c0_1 = arith.constant 0 : index
    %c0_2 = arith.constant 0 : index
    %1 = vector.load %arg2[%c0_1, %c0_2] : memref<1024x392xf32, #tpu.memory_space<vmem>>, vector<1024x392xf32>
    %cst = arith.constant dense<0.000000e+00> : vector<8x392xf32>
    %2 = tpu.matmul %0, %1, %cst {dimension_numbers = #tpu.dot_dimension_numbers<[1], [0], [0], [1], [0, 0, 1, 1], [], []>} : vector<8x1024xf32>, vector<1024x392xf32>, vector<8x392xf32> -> vector<8x392xf32>
    %c0_3 = arith.constant 0 : index
    %c0_4 = arith.constant 0 : index
    %3 = vector.load %arg3[%c0_3, %c0_4] : memref<1x392xf32, #tpu.memory_space<vmem>>, vector<1x392xf32>
    %4 = vector.broadcast %3 : vector<1x392xf32> to vector<8x392xf32>
    %5 = arith.addf %2, %4 : vector<8x392xf32>
    %cst_5 = arith.constant 0.000000e+00 : f32
    %6 = vector.broadcast %cst_5 : f32 to vector<8x392xf32>
    %7 = arith.maximumf %5, %6 : vector<8x392xf32>
    %c0_6 = arith.constant 0 : index
    %c0_7 = arith.constant 0 : index
    %8 = vector.load %arg4[%c0_6, %c0_7] : memref<392x200xf32, #tpu.memory_space<vmem>>, vector<392x200xf32>
    %cst_8 = arith.constant dense<0.000000e+00> : vector<8x200xf32>
    %9 = tpu.matmul %7, %8, %cst_8 {dimension_numbers = #tpu.dot_dimension_numbers<[1], [0], [0], [1], [0, 0, 1, 1], [], []>} : vector<8x392xf32>, vector<392x200xf32>, vector<8x200xf32> -> vector<8x200xf32>
    %c0_9 = arith.constant 0 : index
    %c0_10 = arith.constant 0 : index
    %10 = vector.load %arg5[%c0_9, %c0_10] : memref<1x200xf32, #tpu.memory_space<vmem>>, vector<1x200xf32>
    %11 = vector.broadcast %10 : vector<1x200xf32> to vector<8x200xf32>
    %12 = arith.addf %9, %11 : vector<8x200xf32>
    %cst_11 = arith.constant 0.000000e+00 : f32
    %13 = vector.broadcast %cst_11 : f32 to vector<8x200xf32>
    %14 = arith.maximumf %12, %13 : vector<8x200xf32>
    %c0_12 = arith.constant 0 : index
    %c0_13 = arith.constant 0 : index
    %15 = vector.load %arg6[%c0_12, %c0_13] : memref<200x16xf32, #tpu.memory_space<vmem>>, vector<200x16xf32>
    %cst_14 = arith.constant dense<0.000000e+00> : vector<8x16xf32>
    %16 = tpu.matmul %14, %15, %cst_14 {dimension_numbers = #tpu.dot_dimension_numbers<[1], [0], [0], [1], [0, 0, 1, 1], [], []>} : vector<8x200xf32>, vector<200x16xf32>, vector<8x16xf32> -> vector<8x16xf32>
    %c0_15 = arith.constant 0 : index
    %c0_16 = arith.constant 0 : index
    %17 = vector.load %arg7[%c0_15, %c0_16] : memref<1x16xf32, #tpu.memory_space<vmem>>, vector<1x16xf32>
    %18 = vector.broadcast %17 : vector<1x16xf32> to vector<8x16xf32>
    %19 = arith.addf %16, %18 : vector<8x16xf32>
    %cst_17 = arith.constant dense<0.000000e+00> : vector<8xf32>
    %20 = vector.multi_reduction <add>, %19, %cst_17 [1] : vector<8x16xf32> to vector<8xf32>
    %21 = vector.shape_cast %20 : vector<8xf32> to vector<8x1xf32>
    %cst_18 = arith.constant 1.600000e+01 : f32
    %22 = vector.broadcast %cst_18 : f32 to vector<8x1xf32>
    %23 = arith.divf %21, %22 : vector<8x1xf32>
    %24 = vector.broadcast %23 : vector<8x1xf32> to vector<8x16xf32>
    %25 = arith.subf %19, %24 : vector<8x16xf32>
    %26 = arith.mulf %25, %25 : vector<8x16xf32>
    %cst_19 = arith.constant dense<0.000000e+00> : vector<8xf32>
    %27 = vector.multi_reduction <add>, %26, %cst_19 [1] : vector<8x16xf32> to vector<8xf32>
    %28 = vector.shape_cast %27 : vector<8xf32> to vector<8x1xf32>
    %cst_20 = arith.constant 1.600000e+01 : f32
    %29 = vector.broadcast %cst_20 : f32 to vector<8x1xf32>
    %30 = arith.divf %28, %29 : vector<8x1xf32>
    %31 = vector.broadcast %23 : vector<8x1xf32> to vector<8x16xf32>
    %32 = arith.subf %19, %31 : vector<8x16xf32>
    %cst_21 = arith.constant 9.99999974E-6 : f32
    %33 = vector.broadcast %cst_21 : f32 to vector<8x1xf32>
    %34 = arith.addf %30, %33 : vector<8x1xf32>
    %35 = math.rsqrt %34 : vector<8x1xf32>
    %36 = vector.broadcast %35 : vector<8x1xf32> to vector<8x16xf32>
    %37 = arith.mulf %32, %36 : vector<8x16xf32>
    %c0_22 = arith.constant 0 : index
    %c0_23 = arith.constant 0 : index
    %38 = vector.load %arg8[%c0_22, %c0_23] : memref<1x16xf32, #tpu.memory_space<vmem>>, vector<1x16xf32>
    %39 = vector.broadcast %38 : vector<1x16xf32> to vector<8x16xf32>
    %40 = arith.mulf %37, %39 : vector<8x16xf32>
    %c0_24 = arith.constant 0 : index
    %c0_25 = arith.constant 0 : index
    %41 = vector.load %arg9[%c0_24, %c0_25] : memref<1x16xf32, #tpu.memory_space<vmem>>, vector<1x16xf32>
    %42 = vector.broadcast %41 : vector<1x16xf32> to vector<8x16xf32>
    %43 = arith.addf %40, %42 : vector<8x16xf32>
    %44 = math.tanh %43 : vector<8x16xf32>
    %c0_26 = arith.constant 0 : index
    %c0_27 = arith.constant 0 : index
    %45 = vector.load %arg10[%c0_26, %c0_27] : memref<16x32xf32, #tpu.memory_space<vmem>>, vector<16x32xf32>
    %cst_28 = arith.constant dense<0.000000e+00> : vector<8x32xf32>
    %46 = tpu.matmul %44, %45, %cst_28 {dimension_numbers = #tpu.dot_dimension_numbers<[1], [0], [0], [1], [0, 0, 1, 1], [], []>} : vector<8x16xf32>, vector<16x32xf32>, vector<8x32xf32> -> vector<8x32xf32>
    %c0_29 = arith.constant 0 : index
    %c0_30 = arith.constant 0 : index
    %47 = vector.load %arg11[%c0_29, %c0_30] : memref<1x32xf32, #tpu.memory_space<vmem>>, vector<1x32xf32>
    %48 = vector.broadcast %47 : vector<1x32xf32> to vector<8x32xf32>
    %49 = arith.addf %46, %48 : vector<8x32xf32>
    %cst_31 = arith.constant 0.000000e+00 : f32
    %50 = vector.broadcast %cst_31 : f32 to vector<8x32xf32>
    %51 = arith.maximumf %49, %50 : vector<8x32xf32>
    %c0_32 = arith.constant 0 : index
    %c0_33 = arith.constant 0 : index
    %52 = vector.load %arg12[%c0_32, %c0_33] : memref<32x32xf32, #tpu.memory_space<vmem>>, vector<32x32xf32>
    %cst_34 = arith.constant dense<0.000000e+00> : vector<8x32xf32>
    %53 = tpu.matmul %51, %52, %cst_34 {dimension_numbers = #tpu.dot_dimension_numbers<[1], [0], [0], [1], [0, 0, 1, 1], [], []>} : vector<8x32xf32>, vector<32x32xf32>, vector<8x32xf32> -> vector<8x32xf32>
    %c0_35 = arith.constant 0 : index
    %c0_36 = arith.constant 0 : index
    %54 = vector.load %arg13[%c0_35, %c0_36] : memref<1x32xf32, #tpu.memory_space<vmem>>, vector<1x32xf32>
    %55 = vector.broadcast %54 : vector<1x32xf32> to vector<8x32xf32>
    %56 = arith.addf %53, %55 : vector<8x32xf32>
    %cst_37 = arith.constant 0.000000e+00 : f32
    %57 = vector.broadcast %cst_37 : f32 to vector<8x32xf32>
    %58 = arith.maximumf %56, %57 : vector<8x32xf32>
    %c0_38 = arith.constant 0 : index
    %c0_39 = arith.constant 0 : index
    %59 = vector.load %arg14[%c0_38, %c0_39] : memref<32x256xf32, #tpu.memory_space<vmem>>, vector<32x256xf32>
    %cst_40 = arith.constant dense<0.000000e+00> : vector<8x256xf32>
    %60 = tpu.matmul %58, %59, %cst_40 {dimension_numbers = #tpu.dot_dimension_numbers<[1], [0], [0], [1], [0, 0, 1, 1], [], []>} : vector<8x32xf32>, vector<32x256xf32>, vector<8x256xf32> -> vector<8x256xf32>
    %c0_41 = arith.constant 0 : index
    %c0_42 = arith.constant 0 : index
    %61 = vector.load %arg15[%c0_41, %c0_42] : memref<1x256xf32, #tpu.memory_space<vmem>>, vector<1x256xf32>
    %62 = vector.broadcast %61 : vector<1x256xf32> to vector<8x256xf32>
    %63 = arith.addf %60, %62 : vector<8x256xf32>
    %64 = vector.extract_strided_slice %63 {offsets = [0, 0], sizes = [8, 128], strides = [1, 1]} : vector<8x256xf32> to vector<8x128xf32>
    %c0_43 = arith.constant 0 : index
    %c0_44 = arith.constant 0 : index
    %65 = vector.load %arg16[%c0_43, %c0_44] : memref<8x128xf32, #tpu.memory_space<vmem>>, vector<8x128xf32>
    tpu.vector_store %arg16[%c0_43, %c0_44], %64 {strides = array<i32>} : memref<8x128xf32, #tpu.memory_space<vmem>>, vector<8x128xf32>,
    %66 = vector.extract_strided_slice %63 {offsets = [0, 128], sizes = [8, 128], strides = [1, 1]} : vector<8x256xf32> to vector<8x128xf32>
    %cst_45 = arith.constant -1.000000e+01 : f32
    %cst_46 = arith.constant 2.000000e+00 : f32
    %67 = vector.broadcast %cst_45 : f32 to vector<8x128xf32>
    %68 = arith.maximumf %67, %66 : vector<8x128xf32>
    %69 = vector.broadcast %cst_46 : f32 to vector<8x128xf32>
    %70 = arith.minimumf %69, %68 : vector<8x128xf32>
    %c0_47 = arith.constant 0 : index
    %c0_48 = arith.constant 0 : index
    %71 = vector.load %arg17[%c0_47, %c0_48] : memref<8x128xf32, #tpu.memory_space<vmem>>, vector<8x128xf32>
    tpu.vector_store %arg17[%c0_47, %c0_48], %70 {strides = array<i32>} : memref<8x128xf32, #tpu.memory_space<vmem>>, vector<8x128xf32>,
    return
  }
  func.func @transform_0(%arg0: i32) -> (i32, i32) {
    %c0_i32 = arith.constant 0 : i32
    %c0_i32_0 = arith.constant 0 : i32
    return %arg0, %c0_i32 : i32, i32
  }
  func.func @transform_1(%arg0: i32) -> (i32, i32) {
    %c0_i32 = arith.constant 0 : i32
    %c0_i32_0 = arith.constant 0 : i32
    %c0_i32_1 = arith.constant 0 : i32
    return %c0_i32, %c0_i32_0 : i32, i32
  }
  func.func @transform_2(%arg0: i32) -> (i32, i32) {
    %c0_i32 = arith.constant 0 : i32
    %c0_i32_0 = arith.constant 0 : i32
    %c0_i32_1 = arith.constant 0 : i32
    return %c0_i32, %c0_i32_0 : i32, i32
  }
  func.func @transform_3(%arg0: i32) -> (i32, i32) {
    %c0_i32 = arith.constant 0 : i32
    %c0_i32_0 = arith.constant 0 : i32
    %c0_i32_1 = arith.constant 0 : i32
    return %c0_i32, %c0_i32_0 : i32, i32
  }
  func.func @transform_4(%arg0: i32) -> (i32, i32) {
    %c0_i32 = arith.constant 0 : i32
    %c0_i32_0 = arith.constant 0 : i32
    %c0_i32_1 = arith.constant 0 : i32
    return %c0_i32, %c0_i32_0 : i32, i32
  }
  func.func @transform_5(%arg0: i32) -> (i32, i32) {
    %c0_i32 = arith.constant 0 : i32
    %c0_i32_0 = arith.constant 0 : i32
    %c0_i32_1 = arith.constant 0 : i32
    return %c0_i32, %c0_i32_0 : i32, i32
  }
  func.func @transform_6(%arg0: i32) -> (i32, i32) {
    %c0_i32 = arith.constant 0 : i32
    %c0_i32_0 = arith.constant 0 : i32
    %c0_i32_1 = arith.constant 0 : i32
    return %c0_i32, %c0_i32_0 : i32, i32
  }
  func.func @transform_7(%arg0: i32) -> (i32, i32) {
    %c0_i32 = arith.constant 0 : i32
    %c0_i32_0 = arith.constant 0 : i32
    %c0_i32_1 = arith.constant 0 : i32
    return %c0_i32, %c0_i32_0 : i32, i32
  }
  func.func @transform_8(%arg0: i32) -> (i32, i32) {
    %c0_i32 = arith.constant 0 : i32
    %c0_i32_0 = arith.constant 0 : i32
    %c0_i32_1 = arith.constant 0 : i32
    return %c0_i32, %c0_i32_0 : i32, i32
  }
  func.func @transform_9(%arg0: i32) -> (i32, i32) {
    %c0_i32 = arith.constant 0 : i32
    %c0_i32_0 = arith.constant 0 : i32
    %c0_i32_1 = arith.constant 0 : i32
    return %c0_i32, %c0_i32_0 : i32, i32
  }
  func.func @transform_10(%arg0: i32) -> (i32, i32) {
    %c0_i32 = arith.constant 0 : i32
    %c0_i32_0 = arith.constant 0 : i32
    %c0_i32_1 = arith.constant 0 : i32
    return %c0_i32, %c0_i32_0 : i32, i32
  }
  func.func @transform_11(%arg0: i32) -> (i32, i32) {
    %c0_i32 = arith.constant 0 : i32
    %c0_i32_0 = arith.constant 0 : i32
    %c0_i32_1 = arith.constant 0 : i32
    return %c0_i32, %c0_i32_0 : i32, i32
  }
  func.func @transform_12(%arg0: i32) -> (i32, i32) {
    %c0_i32 = arith.constant 0 : i32
    %c0_i32_0 = arith.constant 0 : i32
    %c0_i32_1 = arith.constant 0 : i32
    return %c0_i32, %c0_i32_0 : i32, i32
  }
  func.func @transform_13(%arg0: i32) -> (i32, i32) {
    %c0_i32 = arith.constant 0 : i32
    %c0_i32_0 = arith.constant 0 : i32
    %c0_i32_1 = arith.constant 0 : i32
    return %c0_i32, %c0_i32_0 : i32, i32
  }
  func.func @transform_14(%arg0: i32) -> (i32, i32) {
    %c0_i32 = arith.constant 0 : i32
    %c0_i32_0 = arith.constant 0 : i32
    %c0_i32_1 = arith.constant 0 : i32
    return %c0_i32, %c0_i32_0 : i32, i32
  }
  func.func @transform_15(%arg0: i32) -> (i32, i32) {
    %c0_i32 = arith.constant 0 : i32
    %c0_i32_0 = arith.constant 0 : i32
    return %arg0, %c0_i32 : i32, i32
  }
  func.func @transform_16(%arg0: i32) -> (i32, i32) {
    %c0_i32 = arith.constant 0 : i32
    %c0_i32_0 = arith.constant 0 : i32
    return %arg0, %c0_i32 : i32, i32
  }
}

</mosaic_0001>

<llo_original>
// kernel: actor_forward.1
$region0: #{actor_forward.1}
  #allocation0 [shape = 'u32[]', space=smem, size = 0x4, offset = 0x4, fixed_abs, tag = 'smem constant byte address 0x4 - core index']
  #allocation1 [shape = 'u32[144,128]{1,0:T(1,128)}', space=vmem, size = 0x12000, scoped, tag = 'internal scratch']
  %s0 = inlined_call_operand.vmem [shape: f32[2,1024], index: 0, kind: input, shape index: {}]
  %s1 = inlined_call_operand.vmem [shape: f32[1024,392], index: 1, kind: input, shape index: {}]
  %s2 = inlined_call_operand.vmem [shape: f32[1,392], index: 2, kind: input, shape index: {}]
  %s3 = inlined_call_operand.vmem [shape: f32[392,200], index: 3, kind: input, shape index: {}]
  %s4 = inlined_call_operand.vmem [shape: f32[1,200], index: 4, kind: input, shape index: {}]
  %s5 = inlined_call_operand.vmem [shape: f32[200,16], index: 5, kind: input, shape index: {}]
  %s6 = inlined_call_operand.vmem [shape: f32[1,16], index: 6, kind: input, shape index: {}]
  %s7 = inlined_call_operand.vmem [shape: f32[1,16], index: 7, kind: input, shape index: {}]
  %s8 = inlined_call_operand.vmem [shape: f32[1,16], index: 8, kind: input, shape index: {}]
  %s9 = inlined_call_operand.vmem [shape: f32[16,32], index: 9, kind: input, shape index: {}]
  %s10 = inlined_call_operand.vmem [shape: f32[1,32], index: 10, kind: input, shape index: {}]
  %s11 = inlined_call_operand.vmem [shape: f32[32,32], index: 11, kind: input, shape index: {}]
  %s12 = inlined_call_operand.vmem [shape: f32[1,32], index: 12, kind: input, shape index: {}]
  %s13 = inlined_call_operand.vmem [shape: f32[32,256], index: 13, kind: input, shape index: {}]
  %s14 = inlined_call_operand.vmem [shape: f32[1,256], index: 14, kind: input, shape index: {}]
  %s15 = inlined_call_operand.hbm [shape: f32[2,128], index: 15, kind: output, shape index: {0}]
  %s16 = inlined_call_operand.hbm [shape: f32[2,128], index: 16, kind: output, shape index: {1}]
  %17 = xla_tuple %s15, %s16
  %s18 = sld [smem:[#allocation0]]
  $region78: #{actor_forward.1} parent=0
    _
  %s20 = ssub.s32 1, %s18
  %s21 = scalar_select 0, %s20, %s18
  $region1: #{actor_forward.1} parent=0
    #allocation2 [shape = 'u8[4096]{0}', space=vmem, size = 0x1000, scoped, tag = 'output window, operand 0, single buffered']
    #allocation3 [shape = 's32[1]{0}', space=sflag, size = 0x4, scoped, tag = 'scoped memory for actor_forward.1']
    #allocation4 [shape = 'u8[4096]{0}', space=vmem, size = 0x1000, scoped, tag = 'output window, operand 1, single buffered']
    #allocation5 [shape = 's32[1]{0}', space=sflag, size = 0x4, scoped, tag = 'scoped memory for actor_forward.1']
    %22 = vsyncpa [#allocation3], 0
    %23 = vsyncpa [#allocation5], 0
    // Predicated region
    $region2: #{actor_forward.1} parent=1 // pred_check
      _
    $region3: #{actor_forward.1} parent=1 // pred_check_branch
      %25 = sbr.rel (0) target = $region5
    $region4: #{actor_forward.1} parent=1 // pred_region
      _
    $region5: #{actor_forward.1} parent=1 // pred_fallthru
      _
    // Predicated region
    $region6: #{actor_forward.1} parent=1 // pred_check
      _
    $region7: #{actor_forward.1} parent=1 // pred_check_branch
      %27 = sbr.rel (0) target = $region9
    $region8: #{actor_forward.1} parent=1 // pred_region
      _
    $region9: #{actor_forward.1} parent=1 // pred_fallthru
      _
    // Predicated region
    $region10: #{actor_forward.1} parent=1 // pred_check
      _
    $region11: #{actor_forward.1} parent=1 // pred_check_branch
      %29 = sbr.rel (0) target = $region13
    $region12: #{actor_forward.1} parent=1 // pred_region
      _
    $region13: #{actor_forward.1} parent=1 // pred_fallthru
      _
    // Predicated region
    $region14: #{actor_forward.1} parent=1 // pred_check
      _
    $region15: #{actor_forward.1} parent=1 // pred_check_branch
      %31 = sbr.rel (0) target = $region17
    $region16: #{actor_forward.1} parent=1 // pred_region
      _
    $region17: #{actor_forward.1} parent=1 // pred_fallthru
      _
    // Predicated region
    $region18: #{actor_forward.1} parent=1 // pred_check
      _
    $region19: #{actor_forward.1} parent=1 // pred_check_branch
      %33 = sbr.rel (0) target = $region21
    $region20: #{actor_forward.1} parent=1 // pred_region
      _
    $region21: #{actor_forward.1} parent=1 // pred_fallthru
      _
    // Predicated region
    $region22: #{actor_forward.1} parent=1 // pred_check
      _
    $region23: #{actor_forward.1} parent=1 // pred_check_branch
      %35 = sbr.rel (0) target = $region25
    $region24: #{actor_forward.1} parent=1 // pred_region
      _
    $region25: #{actor_forward.1} parent=1 // pred_fallthru
      _
    // Predicated region
    $region26: #{actor_forward.1} parent=1 // pred_check
      _
    $region27: #{actor_forward.1} parent=1 // pred_check_branch
      %37 = sbr.rel (0) target = $region29
    $region28: #{actor_forward.1} parent=1 // pred_region
      _
    $region29: #{actor_forward.1} parent=1 // pred_fallthru
      _
    // Predicated region
    $region30: #{actor_forward.1} parent=1 // pred_check
      _
    $region31: #{actor_forward.1} parent=1 // pred_check_branch
      %39 = sbr.rel (0) target = $region33
    $region32: #{actor_forward.1} parent=1 // pred_region
      _
    $region33: #{actor_forward.1} parent=1 // pred_fallthru
      _
    // Predicated region
    $region34: #{actor_forward.1} parent=1 // pred_check
      _
    $region35: #{actor_forward.1} parent=1 // pred_check_branch
      %41 = sbr.rel (0) target = $region37
    $region36: #{actor_forward.1} parent=1 // pred_region
      _
    $region37: #{actor_forward.1} parent=1 // pred_fallthru
      _
    // Predicated region
    $region38: #{actor_forward.1} parent=1 // pred_check
      _
    $region39: #{actor_forward.1} parent=1 // pred_check_branch
      %43 = sbr.rel (0) target = $region41
    $region40: #{actor_forward.1} parent=1 // pred_region
      _
    $region41: #{actor_forward.1} parent=1 // pred_fallthru
      _
    // Predicated region
    $region42: #{actor_forward.1} parent=1 // pred_check
      _
    $region43: #{actor_forward.1} parent=1 // pred_check_branch
      %45 = sbr.rel (0) target = $region45
    $region44: #{actor_forward.1} parent=1 // pred_region
      _
    $region45: #{actor_forward.1} parent=1 // pred_fallthru
      _
    // Predicated region
    $region46: #{actor_forward.1} parent=1 // pred_check
      _
    $region47: #{actor_forward.1} parent=1 // pred_check_branch
      %47 = sbr.rel (0) target = $region49
    $region48: #{actor_forward.1} parent=1 // pred_region
      _
    $region49: #{actor_forward.1} parent=1 // pred_fallthru
      _
    // Predicated region
    $region50: #{actor_forward.1} parent=1 // pred_check
      _
    $region51: #{actor_forward.1} parent=1 // pred_check_branch
      %49 = sbr.rel (0) target = $region53
    $region52: #{actor_forward.1} parent=1 // pred_region
      _
    $region53: #{actor_forward.1} parent=1 // pred_fallthru
      _
    // Predicated region
    $region54: #{actor_forward.1} parent=1 // pred_check
      _
    $region55: #{actor_forward.1} parent=1 // pred_check_branch
      %51 = sbr.rel (0) target = $region57
    $region56: #{actor_forward.1} parent=1 // pred_region
      _
    $region57: #{actor_forward.1} parent=1 // pred_fallthru
      _
    // Predicated region
    $region58: #{actor_forward.1} parent=1 // pred_check
      _
    $region59: #{actor_forward.1} parent=1 // pred_check_branch
      %53 = sbr.rel (0) target = $region61
    $region60: #{actor_forward.1} parent=1 // pred_region
      _
    $region61: #{actor_forward.1} parent=1 // pred_fallthru
      _
    %v54 = vld [vmem:[%s0] sm:$0xff]
    %v55 = vld [vmem:[%s0 + $0x8] sm:$0xff]
    %v56 = vld [vmem:[%s0 + $0x10] sm:$0xff]
    %v57 = vld [vmem:[%s0 + $0x18] sm:$0xff]
    %v58 = vld [vmem:[%s0 + $0x20] sm:$0xff]
    %v59 = vld [vmem:[%s0 + $0x28] sm:$0xff]
    %v60 = vld [vmem:[%s0 + $0x30] sm:$0xff]
    %v61 = vld [vmem:[%s0 + $0x38] sm:$0xff]
    %v62 = vld [vmem:[%s1] sm:$0xff]
    %v63 = vld [vmem:[%s1 + $0x8] sm:$0xff]
    %v64 = vld [vmem:[%s1 + $0x10] sm:$0xff]
    %v65 = vld [vmem:[%s1 + $0x18] sm:$0xff]
    %v66 = vld [vmem:[%s1 + $0x20] sm:$0xff]
    %v67 = vld [vmem:[%s1 + $0x28] sm:$0xff]
    %v68 = vld [vmem:[%s1 + $0x30] sm:$0xff]
    %v69 = vld [vmem:[%s1 + $0x38] sm:$0xff]
    %v70 = vld [vmem:[%s1 + $0x40] sm:$0xff]
    %v71 = vld [vmem:[%s1 + $0x48] sm:$0xff]
    %v72 = vld [vmem:[%s1 + $0x50] sm:$0xff]
    %v73 = vld [vmem:[%s1 + $0x58] sm:$0xff]
    %v74 = vld [vmem:[%s1 + $0x60] sm:$0xff]
    %v75 = vld [vmem:[%s1 + $0x68] sm:$0xff]
    %v76 = vld [vmem:[%s1 + $0x70] sm:$0xff]
    %v77 = vld [vmem:[%s1 + $0x78] sm:$0xff]
    %v78 = vld [vmem:[%s1 + $0x80] sm:$0xff]
    %v79 = vld [vmem:[%s1 + $0x88] sm:$0xff]
    %v80 = vld [vmem:[%s1 + $0x90] sm:$0xff]
    %v81 = vld [vmem:[%s1 + $0x98] sm:$0xff]
    %v82 = vld [vmem:[%s1 + $0xa0] sm:$0xff]
    %v83 = vld [vmem:[%s1 + $0xa8] sm:$0xff]
    %v84 = vld [vmem:[%s1 + $0xb0] sm:$0xff]
    %v85 = vld [vmem:[%s1 + $0xb8] sm:$0xff]
    %v86 = vld [vmem:[%s1 + $0xc0] sm:$0xff]
    %v87 = vld [vmem:[%s1 + $0xc8] sm:$0xff]
    %v88 = vld [vmem:[%s1 + $0xd0] sm:$0xff]
    %v89 = vld [vmem:[%s1 + $0xd8] sm:$0xff]
    %v90 = vld [vmem:[%s1 + $0xe0] sm:$0xff]
    %v91 = vld [vmem:[%s1 + $0xe8] sm:$0xff]
    %v92 = vld [vmem:[%s1 + $0xf0] sm:$0xff]
    %v93 = vld [vmem:[%s1 + $0xf8] sm:$0xff]
    %v94 = vld [vmem:[%s1 + $0x100] sm:$0xff]
    %v95 = vld [vmem:[%s1 + $0x108] sm:$0xff]
    %v96 = vld [vmem:[%s1 + $0x110] sm:$0xff]
    %v97 = vld [vmem:[%s1 + $0x118] sm:$0xff]
    %v98 = vld [vmem:[%s1 + $0x120] sm:$0xff]
    %v99 = vld [vmem:[%s1 + $0x128] sm:$0xff]
    %v100 = vld [vmem:[%s1 + $0x130] sm:$0xff]
    %v101 = vld [vmem:[%s1 + $0x138] sm:$0xff]
    %v102 = vld [vmem:[%s1 + $0x140] sm:$0xff]
    %v103 = vld [vmem:[%s1 + $0x148] sm:$0xff]
    %v104 = vld [vmem:[%s1 + $0x150] sm:$0xff]
    %v105 = vld [vmem:[%s1 + $0x158] sm:$0xff]
    %v106 = vld [vmem:[%s1 + $0x160] sm:$0xff]
    %v107 = vld [vmem:[%s1 + $0x168] sm:$0xff]
    %v108 = vld [vmem:[%s1 + $0x170] sm:$0xff]
    %v109 = vld [vmem:[%s1 + $0x178] sm:$0xff]
    %v110 = vld [vmem:[%s1 + $0x180] sm:$0xff]
    %v111 = vld [vmem:[%s1 + $0x188] sm:$0xff]
    %v112 = vld [vmem:[%s1 + $0x190] sm:$0xff]
    %v113 = vld [vmem:[%s1 + $0x198] sm:$0xff]
    %v114 = vld [vmem:[%s1 + $0x1a0] sm:$0xff]
    %v115 = vld [vmem:[%s1 + $0x1a8] sm:$0xff]
    %v116 = vld [vmem:[%s1 + $0x1b0] sm:$0xff]
    %v117 = vld [vmem:[%s1 + $0x1b8] sm:$0xff]
    %v118 = vld [vmem:[%s1 + $0x1c0] sm:$0xff]
    %v119 = vld [vmem:[%s1 + $0x1c8] sm:$0xff]
    %v120 = vld [vmem:[%s1 + $0x1d0] sm:$0xff]
    %v121 = vld [vmem:[%s1 + $0x1d8] sm:$0xff]
    %v122 = vld [vmem:[%s1 + $0x1e0] sm:$0xff]
    %v123 = vld [vmem:[%s1 + $0x1e8] sm:$0xff]
    %v124 = vld [vmem:[%s1 + $0x1f0] sm:$0xff]
    %v125 = vld [vmem:[%s1 + $0x1f8] sm:$0xff]
    %v126 = vld [vmem:[%s1 + $0x200] sm:$0xff]
    %v127 = vld [vmem:[%s1 + $0x208] sm:$0xff]
    %v128 = vld [vmem:[%s1 + $0x210] sm:$0xff]
    %v129 = vld [vmem:[%s1 + $0x218] sm:$0xff]
    %v130 = vld [vmem:[%s1 + $0x220] sm:$0xff]
    %v131 = vld [vmem:[%s1 + $0x228] sm:$0xff]
    %v132 = vld [vmem:[%s1 + $0x230] sm:$0xff]
    %v133 = vld [vmem:[%s1 + $0x238] sm:$0xff]
    %v134 = vld [vmem:[%s1 + $0x240] sm:$0xff]
    %v135 = vld [vmem:[%s1 + $0x248] sm:$0xff]
    %v136 = vld [vmem:[%s1 + $0x250] sm:$0xff]
    %v137 = vld [vmem:[%s1 + $0x258] sm:$0xff]
    %v138 = vld [vmem:[%s1 + $0x260] sm:$0xff]
    %v139 = vld [vmem:[%s1 + $0x268] sm:$0xff]
    %v140 = vld [vmem:[%s1 + $0x270] sm:$0xff]
    %v141 = vld [vmem:[%s1 + $0x278] sm:$0xff]
    %v142 = vld [vmem:[%s1 + $0x280] sm:$0xff]
    %v143 = vld [vmem:[%s1 + $0x288] sm:$0xff]
    %v144 = vld [vmem:[%s1 + $0x290] sm:$0xff]
    %v145 = vld [vmem:[%s1 + $0x298] sm:$0xff]
    %v146 = vld [vmem:[%s1 + $0x2a0] sm:$0xff]
    %v147 = vld [vmem:[%s1 + $0x2a8] sm:$0xff]
    %v148 = vld [vmem:[%s1 + $0x2b0] sm:$0xff]
    %v149 = vld [vmem:[%s1 + $0x2b8] sm:$0xff]
    %v150 = vld [vmem:[%s1 + $0x2c0] sm:$0xff]
    %v151 = vld [vmem:[%s1 + $0x2c8] sm:$0xff]
    %v152 = vld [vmem:[%s1 + $0x2d0] sm:$0xff]
    %v153 = vld [vmem:[%s1 + $0x2d8] sm:$0xff]
    %v154 = vld [vmem:[%s1 + $0x2e0] sm:$0xff]
    %v155 = vld [vmem:[%s1 + $0x2e8] sm:$0xff]
    %v156 = vld [vmem:[%s1 + $0x2f0] sm:$0xff]
    %v157 = vld [vmem:[%s1 + $0x2f8] sm:$0xff]
    %v158 = vld [vmem:[%s1 + $0x300] sm:$0xff]
    %v159 = vld [vmem:[%s1 + $0x308] sm:$0xff]
    %v160 = vld [vmem:[%s1 + $0x310] sm:$0xff]
    %v161 = vld [vmem:[%s1 + $0x318] sm:$0xff]
    %v162 = vld [vmem:[%s1 + $0x320] sm:$0xff]
    %v163 = vld [vmem:[%s1 + $0x328] sm:$0xff]
    %v164 = vld [vmem:[%s1 + $0x330] sm:$0xff]
    %v165 = vld [vmem:[%s1 + $0x338] sm:$0xff]
    %v166 = vld [vmem:[%s1 + $0x340] sm:$0xff]
    %v167 = vld [vmem:[%s1 + $0x348] sm:$0xff]
    %v168 = vld [vmem:[%s1 + $0x350] sm:$0xff]
    %v169 = vld [vmem:[%s1 + $0x358] sm:$0xff]
    %v170 = vld [vmem:[%s1 + $0x360] sm:$0xff]
    %v171 = vld [vmem:[%s1 + $0x368] sm:$0xff]
    %v172 = vld [vmem:[%s1 + $0x370] sm:$0xff]
    %v173 = vld [vmem:[%s1 + $0x378] sm:$0xff]
    %v174 = vld [vmem:[%s1 + $0x380] sm:$0xff]
    %v175 = vld [vmem:[%s1 + $0x388] sm:$0xff]
    %v176 = vld [vmem:[%s1 + $0x390] sm:$0xff]
    %v177 = vld [vmem:[%s1 + $0x398] sm:$0xff]
    %v178 = vld [vmem:[%s1 + $0x3a0] sm:$0xff]
    %v179 = vld [vmem:[%s1 + $0x3a8] sm:$0xff]
    %v180 = vld [vmem:[%s1 + $0x3b0] sm:$0xff]
    %v181 = vld [vmem:[%s1 + $0x3b8] sm:$0xff]
    %v182 = vld [vmem:[%s1 + $0x3c0] sm:$0xff]
    %v183 = vld [vmem:[%s1 + $0x3c8] sm:$0xff]
    %v184 = vld [vmem:[%s1 + $0x3d0] sm:$0xff]
    %v185 = vld [vmem:[%s1 + $0x3d8] sm:$0xff]
    %v186 = vld [vmem:[%s1 + $0x3e0] sm:$0xff]
    %v187 = vld [vmem:[%s1 + $0x3e8] sm:$0xff]
    %v188 = vld [vmem:[%s1 + $0x3f0] sm:$0xff]
    %v189 = vld [vmem:[%s1 + $0x3f8] sm:$0xff]
    %v190 = vld [vmem:[%s1 + $0x400] sm:$0xff]
    %v191 = vld [vmem:[%s1 + $0x408] sm:$0xff]
    %v192 = vld [vmem:[%s1 + $0x410] sm:$0xff]
    %v193 = vld [vmem:[%s1 + $0x418] sm:$0xff]
    %v194 = vld [vmem:[%s1 + $0x420] sm:$0xff]
    %v195 = vld [vmem:[%s1 + $0x428] sm:$0xff]
    %v196 = vld [vmem:[%s1 + $0x430] sm:$0xff]
    %v197 = vld [vmem:[%s1 + $0x438] sm:$0xff]
    %v198 = vld [vmem:[%s1 + $0x440] sm:$0xff]
    %v199 = vld [vmem:[%s1 + $0x448] sm:$0xff]
    %v200 = vld [vmem:[%s1 + $0x450] sm:$0xff]
    %v201 = vld [vmem:[%s1 + $0x458] sm:$0xff]
    %v202 = vld [vmem:[%s1 + $0x460] sm:$0xff]
    %v203 = vld [vmem:[%s1 + $0x468] sm:$0xff]
    %v204 = vld [vmem:[%s1 + $0x470] sm:$0xff]
    %v205 = vld [vmem:[%s1 + $0x478] sm:$0xff]
    %v206 = vld [vmem:[%s1 + $0x480] sm:$0xff]
    %v207 = vld [vmem:[%s1 + $0x488] sm:$0xff]
    %v208 = vld [vmem:[%s1 + $0x490] sm:$0xff]
    %v209 = vld [vmem:[%s1 + $0x498] sm:$0xff]
    %v210 = vld [vmem:[%s1 + $0x4a0] sm:$0xff]
    %v211 = vld [vmem:[%s1 + $0x4a8] sm:$0xff]
    %v212 = vld [vmem:[%s1 + $0x4b0] sm:$0xff]
    %v213 = vld [vmem:[%s1 + $0x4b8] sm:$0xff]
    %v214 = vld [vmem:[%s1 + $0x4c0] sm:$0xff]
    %v215 = vld [vmem:[%s1 + $0x4c8] sm:$0xff]
    %v216 = vld [vmem:[%s1 + $0x4d0] sm:$0xff]
    %v217 = vld [vmem:[%s1 + $0x4d8] sm:$0xff]
    %v218 = vld [vmem:[%s1 + $0x4e0] sm:$0xff]
    %v219 = vld [vmem:[%s1 + $0x4e8] sm:$0xff]
    %v220 = vld [vmem:[%s1 + $0x4f0] sm:$0xff]
    %v221 = vld [vmem:[%s1 + $0x4f8] sm:$0xff]
    %v222 = vld [vmem:[%s1 + $0x500] sm:$0xff]
    %v223 = vld [vmem:[%s1 + $0x508] sm:$0xff]
    %v224 = vld [vmem:[%s1 + $0x510] sm:$0xff]
    %v225 = vld [vmem:[%s1 + $0x518] sm:$0xff]
    %v226 = vld [vmem:[%s1 + $0x520] sm:$0xff]
    %v227 = vld [vmem:[%s1 + $0x528] sm:$0xff]
    %v228 = vld [vmem:[%s1 + $0x530] sm:$0xff]
    %v229 = vld [vmem:[%s1 + $0x538] sm:$0xff]
    %v230 = vld [vmem:[%s1 + $0x540] sm:$0xff]
    %v231 = vld [vmem:[%s1 + $0x548] sm:$0xff]
    %v232 = vld [vmem:[%s1 + $0x550] sm:$0xff]
    %v233 = vld [vmem:[%s1 + $0x558] sm:$0xff]
    %v234 = vld [vmem:[%s1 + $0x560] sm:$0xff]
    %v235 = vld [vmem:[%s1 + $0x568] sm:$0xff]
    %v236 = vld [vmem:[%s1 + $0x570] sm:$0xff]
    %v237 = vld [vmem:[%s1 + $0x578] sm:$0xff]
    %v238 = vld [vmem:[%s1 + $0x580] sm:$0xff]
    %v239 = vld [vmem:[%s1 + $0x588] sm:$0xff]
    %v240 = vld [vmem:[%s1 + $0x590] sm:$0xff]
    %v241 = vld [vmem:[%s1 + $0x598] sm:$0xff]
    %v242 = vld [vmem:[%s1 + $0x5a0] sm:$0xff]
    %v243 = vld [vmem:[%s1 + $0x5a8] sm:$0xff]
    %v244 = vld [vmem:[%s1 + $0x5b0] sm:$0xff]
    %v245 = vld [vmem:[%s1 + $0x5b8] sm:$0xff]
    %v246 = vld [vmem:[%s1 + $0x5c0] sm:$0xff]
    %v247 = vld [vmem:[%s1 + $0x5c8] sm:$0xff]
    %v248 = vld [vmem:[%s1 + $0x5d0] sm:$0xff]
    %v249 = vld [vmem:[%s1 + $0x5d8] sm:$0xff]
    %v250 = vld [vmem:[%s1 + $0x5e0] sm:$0xff]
    %v251 = vld [vmem:[%s1 + $0x5e8] sm:$0xff]
    %v252 = vld [vmem:[%s1 + $0x5f0] sm:$0xff]
    %v253 = vld [vmem:[%s1 + $0x5f8] sm:$0xff]
    %v254 = vld [vmem:[%s1 + $0x600] sm:$0xff]
    %v255 = vld [vmem:[%s1 + $0x608] sm:$0xff]
    %v256 = vld [vmem:[%s1 + $0x610] sm:$0xff]
    %v257 = vld [vmem:[%s1 + $0x618] sm:$0xff]
    %v258 = vld [vmem:[%s1 + $0x620] sm:$0xff]
    %v259 = vld [vmem:[%s1 + $0x628] sm:$0xff]
    %v260 = vld [vmem:[%s1 + $0x630] sm:$0xff]
    %v261 = vld [vmem:[%s1 + $0x638] sm:$0xff]
    %v262 = vld [vmem:[%s1 + $0x640] sm:$0xff]
    %v263 = vld [vmem:[%s1 + $0x648] sm:$0xff]
    %v264 = vld [vmem:[%s1 + $0x650] sm:$0xff]
    %v265 = vld [vmem:[%s1 + $0x658] sm:$0xff]
    %v266 = vld [vmem:[%s1 + $0x660] sm:$0xff]
    %v267 = vld [vmem:[%s1 + $0x668] sm:$0xff]
    %v268 = vld [vmem:[%s1 + $0x670] sm:$0xff]
    %v269 = vld [vmem:[%s1 + $0x678] sm:$0xff]
    %v270 = vld [vmem:[%s1 + $0x680] sm:$0xff]
    %v271 = vld [vmem:[%s1 + $0x688] sm:$0xff]
    %v272 = vld [vmem:[%s1 + $0x690] sm:$0xff]
    %v273 = vld [vmem:[%s1 + $0x698] sm:$0xff]
    %v274 = vld [vmem:[%s1 + $0x6a0] sm:$0xff]
    %v275 = vld [vmem:[%s1 + $0x6a8] sm:$0xff]
    %v276 = vld [vmem:[%s1 + $0x6b0] sm:$0xff]
    %v277 = vld [vmem:[%s1 + $0x6b8] sm:$0xff]
    %v278 = vld [vmem:[%s1 + $0x6c0] sm:$0xff]
    %v279 = vld [vmem:[%s1 + $0x6c8] sm:$0xff]
    %v280 = vld [vmem:[%s1 + $0x6d0] sm:$0xff]
    %v281 = vld [vmem:[%s1 + $0x6d8] sm:$0xff]
    %v282 = vld [vmem:[%s1 + $0x6e0] sm:$0xff]
    %v283 = vld [vmem:[%s1 + $0x6e8] sm:$0xff]
    %v284 = vld [vmem:[%s1 + $0x6f0] sm:$0xff]
    %v285 = vld [vmem:[%s1 + $0x6f8] sm:$0xff]
    %v286 = vld [vmem:[%s1 + $0x700] sm:$0xff]
    %v287 = vld [vmem:[%s1 + $0x708] sm:$0xff]
    %v288 = vld [vmem:[%s1 + $0x710] sm:$0xff]
    %v289 = vld [vmem:[%s1 + $0x718] sm:$0xff]
    %v290 = vld [vmem:[%s1 + $0x720] sm:$0xff]
    %v291 = vld [vmem:[%s1 + $0x728] sm:$0xff]
    %v292 = vld [vmem:[%s1 + $0x730] sm:$0xff]
    %v293 = vld [vmem:[%s1 + $0x738] sm:$0xff]
    %v294 = vld [vmem:[%s1 + $0x740] sm:$0xff]
    %v295 = vld [vmem:[%s1 + $0x748] sm:$0xff]
    %v296 = vld [vmem:[%s1 + $0x750] sm:$0xff]
    %v297 = vld [vmem:[%s1 + $0x758] sm:$0xff]
    %v298 = vld [vmem:[%s1 + $0x760] sm:$0xff]
    %v299 = vld [vmem:[%s1 + $0x768] sm:$0xff]
    %v300 = vld [vmem:[%s1 + $0x770] sm:$0xff]
    %v301 = vld [vmem:[%s1 + $0x778] sm:$0xff]
    %v302 = vld [vmem:[%s1 + $0x780] sm:$0xff]
    %v303 = vld [vmem:[%s1 + $0x788] sm:$0xff]
    %v304 = vld [vmem:[%s1 + $0x790] sm:$0xff]
    %v305 = vld [vmem:[%s1 + $0x798] sm:$0xff]
    %v306 = vld [vmem:[%s1 + $0x7a0] sm:$0xff]
    %v307 = vld [vmem:[%s1 + $0x7a8] sm:$0xff]
    %v308 = vld [vmem:[%s1 + $0x7b0] sm:$0xff]
    %v309 = vld [vmem:[%s1 + $0x7b8] sm:$0xff]
    %v310 = vld [vmem:[%s1 + $0x7c0] sm:$0xff]
    %v311 = vld [vmem:[%s1 + $0x7c8] sm:$0xff]
    %v312 = vld [vmem:[%s1 + $0x7d0] sm:$0xff]
    %v313 = vld [vmem:[%s1 + $0x7d8] sm:$0xff]
    %v314 = vld [vmem:[%s1 + $0x7e0] sm:$0xff]
    %v315 = vld [vmem:[%s1 + $0x7e8] sm:$0xff]
    %v316 = vld [vmem:[%s1 + $0x7f0] sm:$0xff]
    %v317 = vld [vmem:[%s1 + $0x7f8] sm:$0xff]
    %v318 = vld [vmem:[%s1 + $0x800] sm:$0xff]
    %v319 = vld [vmem:[%s1 + $0x808] sm:$0xff]
    %v320 = vld [vmem:[%s1 + $0x810] sm:$0xff]
    %v321 = vld [vmem:[%s1 + $0x818] sm:$0xff]
    %v322 = vld [vmem:[%s1 + $0x820] sm:$0xff]
    %v323 = vld [vmem:[%s1 + $0x828] sm:$0xff]
    %v324 = vld [vmem:[%s1 + $0x830] sm:$0xff]
    %v325 = vld [vmem:[%s1 + $0x838] sm:$0xff]
    %v326 = vld [vmem:[%s1 + $0x840] sm:$0xff]
    %v327 = vld [vmem:[%s1 + $0x848] sm:$0xff]
    %v328 = vld [vmem:[%s1 + $0x850] sm:$0xff]
    %v329 = vld [vmem:[%s1 + $0x858] sm:$0xff]
    %v330 = vld [vmem:[%s1 + $0x860] sm:$0xff]
    %v331 = vld [vmem:[%s1 + $0x868] sm:$0xff]
    %v332 = vld [vmem:[%s1 + $0x870] sm:$0xff]
    %v333 = vld [vmem:[%s1 + $0x878] sm:$0xff]
    %v334 = vld [vmem:[%s1 + $0x880] sm:$0xff]
    %v335 = vld [vmem:[%s1 + $0x888] sm:$0xff]
    %v336 = vld [vmem:[%s1 + $0x890] sm:$0xff]
    %v337 = vld [vmem:[%s1 + $0x898] sm:$0xff]
    %v338 = vld [vmem:[%s1 + $0x8a0] sm:$0xff]
    %v339 = vld [vmem:[%s1 + $0x8a8] sm:$0xff]
    %v340 = vld [vmem:[%s1 + $0x8b0] sm:$0xff]
    %v341 = vld [vmem:[%s1 + $0x8b8] sm:$0xff]
    %v342 = vld [vmem:[%s1 + $0x8c0] sm:$0xff]
    %v343 = vld [vmem:[%s1 + $0x8c8] sm:$0xff]
    %v344 = vld [vmem:[%s1 + $0x8d0] sm:$0xff]
    %v345 = vld [vmem:[%s1 + $0x8d8] sm:$0xff]
    %v346 = vld [vmem:[%s1 + $0x8e0] sm:$0xff]
    %v347 = vld [vmem:[%s1 + $0x8e8] sm:$0xff]
    %v348 = vld [vmem:[%s1 + $0x8f0] sm:$0xff]
    %v349 = vld [vmem:[%s1 + $0x8f8] sm:$0xff]
    %v350 = vld [vmem:[%s1 + $0x900] sm:$0xff]
    %v351 = vld [vmem:[%s1 + $0x908] sm:$0xff]
    %v352 = vld [vmem:[%s1 + $0x910] sm:$0xff]
    %v353 = vld [vmem:[%s1 + $0x918] sm:$0xff]
    %v354 = vld [vmem:[%s1 + $0x920] sm:$0xff]
    %v355 = vld [vmem:[%s1 + $0x928] sm:$0xff]
    %v356 = vld [vmem:[%s1 + $0x930] sm:$0xff]
    %v357 = vld [vmem:[%s1 + $0x938] sm:$0xff]
    %v358 = vld [vmem:[%s1 + $0x940] sm:$0xff]
    %v359 = vld [vmem:[%s1 + $0x948] sm:$0xff]
    %v360 = vld [vmem:[%s1 + $0x950] sm:$0xff]
    %v361 = vld [vmem:[%s1 + $0x958] sm:$0xff]
    %v362 = vld [vmem:[%s1 + $0x960] sm:$0xff]
    %v363 = vld [vmem:[%s1 + $0x968] sm:$0xff]
    %v364 = vld [vmem:[%s1 + $0x970] sm:$0xff]
    %v365 = vld [vmem:[%s1 + $0x978] sm:$0xff]
    %v366 = vld [vmem:[%s1 + $0x980] sm:$0xff]
    %v367 = vld [vmem:[%s1 + $0x988] sm:$0xff]
    %v368 = vld [vmem:[%s1 + $0x990] sm:$0xff]
    %v369 = vld [vmem:[%s1 + $0x998] sm:$0xff]
    %v370 = vld [vmem:[%s1 + $0x9a0] sm:$0xff]
    %v371 = vld [vmem:[%s1 + $0x9a8] sm:$0xff]
    %v372 = vld [vmem:[%s1 + $0x9b0] sm:$0xff]
    %v373 = vld [vmem:[%s1 + $0x9b8] sm:$0xff]
    %v374 = vld [vmem:[%s1 + $0x9c0] sm:$0xff]
    %v375 = vld [vmem:[%s1 + $0x9c8] sm:$0xff]
    %v376 = vld [vmem:[%s1 + $0x9d0] sm:$0xff]
    %v377 = vld [vmem:[%s1 + $0x9d8] sm:$0xff]
    %v378 = vld [vmem:[%s1 + $0x9e0] sm:$0xff]
    %v379 = vld [vmem:[%s1 + $0x9e8] sm:$0xff]
    %v380 = vld [vmem:[%s1 + $0x9f0] sm:$0xff]
    %v381 = vld [vmem:[%s1 + $0x9f8] sm:$0xff]
    %v382 = vld [vmem:[%s1 + $0xa00] sm:$0xff]
    %v383 = vld [vmem:[%s1 + $0xa08] sm:$0xff]
    %v384 = vld [vmem:[%s1 + $0xa10] sm:$0xff]
    %v385 = vld [vmem:[%s1 + $0xa18] sm:$0xff]
    %v386 = vld [vmem:[%s1 + $0xa20] sm:$0xff]
    %v387 = vld [vmem:[%s1 + $0xa28] sm:$0xff]
    %v388 = vld [vmem:[%s1 + $0xa30] sm:$0xff]
    %v389 = vld [vmem:[%s1 + $0xa38] sm:$0xff]
    %v390 = vld [vmem:[%s1 + $0xa40] sm:$0xff]
    %v391 = vld [vmem:[%s1 + $0xa48] sm:$0xff]
    %v392 = vld [vmem:[%s1 + $0xa50] sm:$0xff]
    %v393 = vld [vmem:[%s1 + $0xa58] sm:$0xff]
    %v394 = vld [vmem:[%s1 + $0xa60] sm:$0xff]
    %v395 = vld [vmem:[%s1 + $0xa68] sm:$0xff]
    %v396 = vld [vmem:[%s1 + $0xa70] sm:$0xff]
    %v397 = vld [vmem:[%s1 + $0xa78] sm:$0xff]
    %v398 = vld [vmem:[%s1 + $0xa80] sm:$0xff]
    %v399 = vld [vmem:[%s1 + $0xa88] sm:$0xff]
    %v400 = vld [vmem:[%s1 + $0xa90] sm:$0xff]
    %v401 = vld [vmem:[%s1 + $0xa98] sm:$0xff]
    %v402 = vld [vmem:[%s1 + $0xaa0] sm:$0xff]
    %v403 = vld [vmem:[%s1 + $0xaa8] sm:$0xff]
    %v404 = vld [vmem:[%s1 + $0xab0] sm:$0xff]
    %v405 = vld [vmem:[%s1 + $0xab8] sm:$0xff]
    %v406 = vld [vmem:[%s1 + $0xac0] sm:$0xff]
    %v407 = vld [vmem:[%s1 + $0xac8] sm:$0xff]
    %v408 = vld [vmem:[%s1 + $0xad0] sm:$0xff]
    %v409 = vld [vmem:[%s1 + $0xad8] sm:$0xff]
    %v410 = vld [vmem:[%s1 + $0xae0] sm:$0xff]
    %v411 = vld [vmem:[%s1 + $0xae8] sm:$0xff]
    %v412 = vld [vmem:[%s1 + $0xaf0] sm:$0xff]
    %v413 = vld [vmem:[%s1 + $0xaf8] sm:$0xff]
    %v414 = vld [vmem:[%s1 + $0xb00] sm:$0xff]
    %v415 = vld [vmem:[%s1 + $0xb08] sm:$0xff]
    %v416 = vld [vmem:[%s1 + $0xb10] sm:$0xff]
    %v417 = vld [vmem:[%s1 + $0xb18] sm:$0xff]
    %v418 = vld [vmem:[%s1 + $0xb20] sm:$0xff]
    %v419 = vld [vmem:[%s1 + $0xb28] sm:$0xff]
    %v420 = vld [vmem:[%s1 + $0xb30] sm:$0xff]
    %v421 = vld [vmem:[%s1 + $0xb38] sm:$0xff]
    %v422 = vld [vmem:[%s1 + $0xb40] sm:$0xff]
    %v423 = vld [vmem:[%s1 + $0xb48] sm:$0xff]
    %v424 = vld [vmem:[%s1 + $0xb50] sm:$0xff]
    %v425 = vld [vmem:[%s1 + $0xb58] sm:$0xff]
    %v426 = vld [vmem:[%s1 + $0xb60] sm:$0xff]
    %v427 = vld [vmem:[%s1 + $0xb68] sm:$0xff]
    %v428 = vld [vmem:[%s1 + $0xb70] sm:$0xff]
    %v429 = vld [vmem:[%s1 + $0xb78] sm:$0xff]
    %v430 = vld [vmem:[%s1 + $0xb80] sm:$0xff]
    %v431 = vld [vmem:[%s1 + $0xb88] sm:$0xff]
    %v432 = vld [vmem:[%s1 + $0xb90] sm:$0xff]
    %v433 = vld [vmem:[%s1 + $0xb98] sm:$0xff]
    %v434 = vld [vmem:[%s1 + $0xba0] sm:$0xff]
    %v435 = vld [vmem:[%s1 + $0xba8] sm:$0xff]
    %v436 = vld [vmem:[%s1 + $0xbb0] sm:$0xff]
    %v437 = vld [vmem:[%s1 + $0xbb8] sm:$0xff]
    %v438 = vld [vmem:[%s1 + $0xbc0] sm:$0xff]
    %v439 = vld [vmem:[%s1 + $0xbc8] sm:$0xff]
    %v440 = vld [vmem:[%s1 + $0xbd0] sm:$0xff]
    %v441 = vld [vmem:[%s1 + $0xbd8] sm:$0xff]
    %v442 = vld [vmem:[%s1 + $0xbe0] sm:$0xff]
    %v443 = vld [vmem:[%s1 + $0xbe8] sm:$0xff]
    %v444 = vld [vmem:[%s1 + $0xbf0] sm:$0xff]
    %v445 = vld [vmem:[%s1 + $0xbf8] sm:$0xff]
    %v446 = vld [vmem:[%s1 + $0xc00] sm:$0xff]
    %v447 = vld [vmem:[%s1 + $0xc08] sm:$0xff]
    %v448 = vld [vmem:[%s1 + $0xc10] sm:$0xff]
    %v449 = vld [vmem:[%s1 + $0xc18] sm:$0xff]
    %v450 = vld [vmem:[%s1 + $0xc20] sm:$0xff]
    %v451 = vld [vmem:[%s1 + $0xc28] sm:$0xff]
    %v452 = vld [vmem:[%s1 + $0xc30] sm:$0xff]
    %v453 = vld [vmem:[%s1 + $0xc38] sm:$0xff]
    %v454 = vld [vmem:[%s1 + $0xc40] sm:$0xff]
    %v455 = vld [vmem:[%s1 + $0xc48] sm:$0xff]
    %v456 = vld [vmem:[%s1 + $0xc50] sm:$0xff]
    %v457 = vld [vmem:[%s1 + $0xc58] sm:$0xff]
    %v458 = vld [vmem:[%s1 + $0xc60] sm:$0xff]
    %v459 = vld [vmem:[%s1 + $0xc68] sm:$0xff]
    %v460 = vld [vmem:[%s1 + $0xc70] sm:$0xff]
    %v461 = vld [vmem:[%s1 + $0xc78] sm:$0xff]
    %v462 = vld [vmem:[%s1 + $0xc80] sm:$0xff]
    %v463 = vld [vmem:[%s1 + $0xc88] sm:$0xff]
    %v464 = vld [vmem:[%s1 + $0xc90] sm:$0xff]
    %v465 = vld [vmem:[%s1 + $0xc98] sm:$0xff]
    %v466 = vld [vmem:[%s1 + $0xca0] sm:$0xff]
    %v467 = vld [vmem:[%s1 + $0xca8] sm:$0xff]
    %v468 = vld [vmem:[%s1 + $0xcb0] sm:$0xff]
    %v469 = vld [vmem:[%s1 + $0xcb8] sm:$0xff]
    %v470 = vld [vmem:[%s1 + $0xcc0] sm:$0xff]
    %v471 = vld [vmem:[%s1 + $0xcc8] sm:$0xff]
    %v472 = vld [vmem:[%s1 + $0xcd0] sm:$0xff]
    %v473 = vld [vmem:[%s1 + $0xcd8] sm:$0xff]
    %v474 = vld [vmem:[%s1 + $0xce0] sm:$0xff]
    %v475 = vld [vmem:[%s1 + $0xce8] sm:$0xff]
    %v476 = vld [vmem:[%s1 + $0xcf0] sm:$0xff]
    %v477 = vld [vmem:[%s1 + $0xcf8] sm:$0xff]
    %v478 = vld [vmem:[%s1 + $0xd00] sm:$0xff]
    %v479 = vld [vmem:[%s1 + $0xd08] sm:$0xff]
    %v480 = vld [vmem:[%s1 + $0xd10] sm:$0xff]
    %v481 = vld [vmem:[%s1 + $0xd18] sm:$0xff]
    %v482 = vld [vmem:[%s1 + $0xd20] sm:$0xff]
    %v483 = vld [vmem:[%s1 + $0xd28] sm:$0xff]
    %v484 = vld [vmem:[%s1 + $0xd30] sm:$0xff]
    %v485 = vld [vmem:[%s1 + $0xd38] sm:$0xff]
    %v486 = vld [vmem:[%s1 + $0xd40] sm:$0xff]
    %v487 = vld [vmem:[%s1 + $0xd48] sm:$0xff]
    %v488 = vld [vmem:[%s1 + $0xd50] sm:$0xff]
    %v489 = vld [vmem:[%s1 + $0xd58] sm:$0xff]
    %v490 = vld [vmem:[%s1 + $0xd60] sm:$0xff]
    %v491 = vld [vmem:[%s1 + $0xd68] sm:$0xff]
    %v492 = vld [vmem:[%s1 + $0xd70] sm:$0xff]
    %v493 = vld [vmem:[%s1 + $0xd78] sm:$0xff]
    %v494 = vld [vmem:[%s1 + $0xd80] sm:$0xff]
    %v495 = vld [vmem:[%s1 + $0xd88] sm:$0xff]
    %v496 = vld [vmem:[%s1 + $0xd90] sm:$0xff]
    %v497 = vld [vmem:[%s1 + $0xd98] sm:$0xff]
    %v498 = vld [vmem:[%s1 + $0xda0] sm:$0xff]
    %v499 = vld [vmem:[%s1 + $0xda8] sm:$0xff]
    %v500 = vld [vmem:[%s1 + $0xdb0] sm:$0xff]
    %v501 = vld [vmem:[%s1 + $0xdb8] sm:$0xff]
    %v502 = vld [vmem:[%s1 + $0xdc0] sm:$0xff]
    %v503 = vld [vmem:[%s1 + $0xdc8] sm:$0xff]
    %v504 = vld [vmem:[%s1 + $0xdd0] sm:$0xff]
    %v505 = vld [vmem:[%s1 + $0xdd8] sm:$0xff]
    %v506 = vld [vmem:[%s1 + $0xde0] sm:$0xff]
    %v507 = vld [vmem:[%s1 + $0xde8] sm:$0xff]
    %v508 = vld [vmem:[%s1 + $0xdf0] sm:$0xff]
    %v509 = vld [vmem:[%s1 + $0xdf8] sm:$0xff]
    %v510 = vld [vmem:[%s1 + $0xe00] sm:$0xff]
    %v511 = vld [vmem:[%s1 + $0xe08] sm:$0xff]
    %v512 = vld [vmem:[%s1 + $0xe10] sm:$0xff]
    %v513 = vld [vmem:[%s1 + $0xe18] sm:$0xff]
    %v514 = vld [vmem:[%s1 + $0xe20] sm:$0xff]
    %v515 = vld [vmem:[%s1 + $0xe28] sm:$0xff]
    %v516 = vld [vmem:[%s1 + $0xe30] sm:$0xff]
    %v517 = vld [vmem:[%s1 + $0xe38] sm:$0xff]
    %v518 = vld [vmem:[%s1 + $0xe40] sm:$0xff]
    %v519 = vld [vmem:[%s1 + $0xe48] sm:$0xff]
    %v520 = vld [vmem:[%s1 + $0xe50] sm:$0xff]
    %v521 = vld [vmem:[%s1 + $0xe58] sm:$0xff]
    %v522 = vld [vmem:[%s1 + $0xe60] sm:$0xff]
    %v523 = vld [vmem:[%s1 + $0xe68] sm:$0xff]
    %v524 = vld [vmem:[%s1 + $0xe70] sm:$0xff]
    %v525 = vld [vmem:[%s1 + $0xe78] sm:$0xff]
    %v526 = vld [vmem:[%s1 + $0xe80] sm:$0xff]
    %v527 = vld [vmem:[%s1 + $0xe88] sm:$0xff]
    %v528 = vld [vmem:[%s1 + $0xe90] sm:$0xff]
    %v529 = vld [vmem:[%s1 + $0xe98] sm:$0xff]
    %v530 = vld [vmem:[%s1 + $0xea0] sm:$0xff]
    %v531 = vld [vmem:[%s1 + $0xea8] sm:$0xff]
    %v532 = vld [vmem:[%s1 + $0xeb0] sm:$0xff]
    %v533 = vld [vmem:[%s1 + $0xeb8] sm:$0xff]
    %v534 = vld [vmem:[%s1 + $0xec0] sm:$0xff]
    %v535 = vld [vmem:[%s1 + $0xec8] sm:$0xff]
    %v536 = vld [vmem:[%s1 + $0xed0] sm:$0xff]
    %v537 = vld [vmem:[%s1 + $0xed8] sm:$0xff]
    %v538 = vld [vmem:[%s1 + $0xee0] sm:$0xff]
    %v539 = vld [vmem:[%s1 + $0xee8] sm:$0xff]
    %v540 = vld [vmem:[%s1 + $0xef0] sm:$0xff]
    %v541 = vld [vmem:[%s1 + $0xef8] sm:$0xff]
    %v542 = vld [vmem:[%s1 + $0xf00] sm:$0xff]
    %v543 = vld [vmem:[%s1 + $0xf08] sm:$0xff]
    %v544 = vld [vmem:[%s1 + $0xf10] sm:$0xff]
    %v545 = vld [vmem:[%s1 + $0xf18] sm:$0xff]
    %v546 = vld [vmem:[%s1 + $0xf20] sm:$0xff]
    %v547 = vld [vmem:[%s1 + $0xf28] sm:$0xff]
    %v548 = vld [vmem:[%s1 + $0xf30] sm:$0xff]
    %v549 = vld [vmem:[%s1 + $0xf38] sm:$0xff]
    %v550 = vld [vmem:[%s1 + $0xf40] sm:$0xff]
    %v551 = vld [vmem:[%s1 + $0xf48] sm:$0xff]
    %v552 = vld [vmem:[%s1 + $0xf50] sm:$0xff]
    %v553 = vld [vmem:[%s1 + $0xf58] sm:$0xff]
    %v554 = vld [vmem:[%s1 + $0xf60] sm:$0xff]
    %v555 = vld [vmem:[%s1 + $0xf68] sm:$0xff]
    %v556 = vld [vmem:[%s1 + $0xf70] sm:$0xff]
    %v557 = vld [vmem:[%s1 + $0xf78] sm:$0xff]
    %v558 = vld [vmem:[%s1 + $0xf80] sm:$0xff]
    %v559 = vld [vmem:[%s1 + $0xf88] sm:$0xff]
    %v560 = vld [vmem:[%s1 + $0xf90] sm:$0xff]
    %v561 = vld [vmem:[%s1 + $0xf98] sm:$0xff]
    %v562 = vld [vmem:[%s1 + $0xfa0] sm:$0xff]
    %v563 = vld [vmem:[%s1 + $0xfa8] sm:$0xff]
    %v564 = vld [vmem:[%s1 + $0xfb0] sm:$0xff]
    %v565 = vld [vmem:[%s1 + $0xfb8] sm:$0xff]
    %v566 = vld [vmem:[%s1 + $0xfc0] sm:$0xff]
    %v567 = vld [vmem:[%s1 + $0xfc8] sm:$0xff]
    %v568 = vld [vmem:[%s1 + $0xfd0] sm:$0xff]
    %v569 = vld [vmem:[%s1 + $0xfd8] sm:$0xff]
    %v570 = vld [vmem:[%s1 + $0xfe0] sm:$0xff]
    %v571 = vld [vmem:[%s1 + $0xfe8] sm:$0xff]
    %v572 = vld [vmem:[%s1 + $0xff0] sm:$0xff]
    %v573 = vld [vmem:[%s1 + $0xff8] sm:$0xff]
    %v574 = vld [vmem:[%s2] sm:$0xf]
    %v576 = vlaneseq
    %v577 = vshrl.u32 %v576, 7
    %v578 = vsub.s32 0, %v577
    %v579 = vrot.slane %v574, %v578
    %v580 = vlaneseq
    %v581 = vshrl.u32 %v580, 7
    %v582 = vsub.s32 1, %v581
    %v583 = vrot.slane %v574, %v582
    %v584 = vlaneseq
    %v585 = vshrl.u32 %v584, 7
    %v586 = vsub.s32 2, %v585
    %v587 = vrot.slane %v574, %v586
    %v588 = vlaneseq
    %v589 = vshrl.u32 %v588, 7
    %v590 = vsub.s32 3, %v589
    %v591 = vrot.slane %v574, %v590
    %v604 = vcombine.low %v54, %v56
    %v605 = vcombine.high %v54, %v56
    %v606 = vcombine.low %v58, %v60
    %v607 = vcombine.high %v58, %v60
    %v609 = vunpack.c.l.s4 1983009808
    %v610 = vunpack.c.0.s8 %v609
    %v611 = vlaneseq
    %v612 = vshrl.u32 %v611, 7
    %v613 = vsub.s32 %v610, %v612
    %v614 = vrot.slane %v604, %v613
    %v616 = vunpack.c.l.s4 1983009808
    %v617 = vunpack.c.0.s8 %v616
    %v618 = vlaneseq
    %v619 = vshrl.u32 %v618, 7
    %v620 = vsub.s32 %v617, %v619
    %v621 = vrot.slane %v605, %v620
    %v623 = vunpack.c.l.s4 1983009808
    %v624 = vunpack.c.0.s8 %v623
    %v625 = vlaneseq
    %v626 = vshrl.u32 %v625, 7
    %v627 = vsub.s32 %v624, %v626
    %v628 = vrot.slane %v606, %v627
    %v630 = vunpack.c.l.s4 1983009808
    %v631 = vunpack.c.0.s8 %v630
    %v632 = vlaneseq
    %v633 = vshrl.u32 %v632, 7
    %v634 = vsub.s32 %v631, %v633
    %v635 = vrot.slane %v607, %v634
    %v636 = vcombine.low %v614, %v628
    %v637 = vcombine.high %v614, %v628
    %v638 = vcombine.low %v621, %v635
    %v639 = vcombine.high %v621, %v635
    %v640 = vcombine.low %v55, %v57
    %v641 = vcombine.high %v55, %v57
    %v642 = vcombine.low %v59, %v61
    %v643 = vcombine.high %v59, %v61
    %v645 = vunpack.c.l.s4 1983009808
    %v646 = vunpack.c.0.s8 %v645
    %v647 = vlaneseq
    %v648 = vshrl.u32 %v647, 7
    %v649 = vsub.s32 %v646, %v648
    %v650 = vrot.slane %v640, %v649
    %v652 = vunpack.c.l.s4 1983009808
    %v653 = vunpack.c.0.s8 %v652
    %v654 = vlaneseq
    %v655 = vshrl.u32 %v654, 7
    %v656 = vsub.s32 %v653, %v655
    %v657 = vrot.slane %v641, %v656
    %v659 = vunpack.c.l.s4 1983009808
    %v660 = vunpack.c.0.s8 %v659
    %v661 = vlaneseq
    %v662 = vshrl.u32 %v661, 7
    %v663 = vsub.s32 %v660, %v662
    %v664 = vrot.slane %v642, %v663
    %v666 = vunpack.c.l.s4 1983009808
    %v667 = vunpack.c.0.s8 %v666
    %v668 = vlaneseq
    %v669 = vshrl.u32 %v668, 7
    %v670 = vsub.s32 %v667, %v669
    %v671 = vrot.slane %v643, %v670
    %v672 = vcombine.low %v650, %v664
    %v673 = vcombine.high %v650, %v664
    %v674 = vcombine.low %v657, %v671
    %v675 = vcombine.high %v657, %v671
    %684 = vmatprep.subr.mxu0 %v63
    %685 = vmatpush1.msra.mxu0 %v62
    %686 = vmatprep.subr.mxu0 %v67
    %687 = vmatpush1.msra.mxu0 %v66
    %688 = vmatprep.subr.mxu0 %v71
    %689 = vmatpush1.msra.mxu0 %v70
    %690 = vmatprep.subr.mxu0 %v75
    %691 = vmatpush1.msra.mxu0 %v74
    %692 = vmatprep.subr.mxu0 %v79
    %693 = vmatpush1.msra.mxu0 %v78
    %694 = vmatprep.subr.mxu0 %v83
    %695 = vmatpush1.msra.mxu0 %v82
    %696 = vmatprep.subr.mxu0 %v87
    %697 = vmatpush1.msra.mxu0 %v86
    %698 = vmatprep.subr.mxu0 %v91
    %699 = vmatpush1.msra.mxu0 %v90
    %700 = vmatprep.subr.mxu0 %v95
    %701 = vmatpush1.msra.mxu0 %v94
    %702 = vmatprep.subr.mxu0 %v99
    %703 = vmatpush1.msra.mxu0 %v98
    %704 = vmatprep.subr.mxu0 %v103
    %705 = vmatpush1.msra.mxu0 %v102
    %706 = vmatprep.subr.mxu0 %v107
    %707 = vmatpush1.msra.mxu0 %v106
    %708 = vmatprep.subr.mxu0 %v111
    %709 = vmatpush1.msra.mxu0 %v110
    %710 = vmatprep.subr.mxu0 %v115
    %711 = vmatpush1.msra.mxu0 %v114
    %712 = vmatprep.subr.mxu0 %v119
    %713 = vmatpush1.msra.mxu0 %v118
    %714 = vmatprep.subr.mxu0 %v123
    %715 = vmatpush1.msra.mxu0 %v122
    %716 = vmatprep.subr.mxu0 %v127
    %717 = vmatpush1.msra.mxu0 %v126
    %718 = vmatprep.subr.mxu0 %v131
    %719 = vmatpush1.msra.mxu0 %v130
    %720 = vmatprep.subr.mxu0 %v135
    %721 = vmatpush1.msra.mxu0 %v134
    %722 = vmatprep.subr.mxu0 %v139
    %723 = vmatpush1.msra.mxu0 %v138
    %724 = vmatprep.subr.mxu0 %v143
    %725 = vmatpush1.msra.mxu0 %v142
    %726 = vmatprep.subr.mxu0 %v147
    %727 = vmatpush1.msra.mxu0 %v146
    %728 = vmatprep.subr.mxu0 %v151
    %729 = vmatpush1.msra.mxu0 %v150
    %730 = vmatprep.subr.mxu0 %v155
    %731 = vmatpush1.msra.mxu0 %v154
    %732 = vmatprep.subr.mxu0 %v159
    %733 = vmatpush1.msra.mxu0 %v158
    %734 = vmatprep.subr.mxu0 %v163
    %735 = vmatpush1.msra.mxu0 %v162
    %736 = vmatprep.subr.mxu0 %v167
    %737 = vmatpush1.msra.mxu0 %v166
    %738 = vmatprep.subr.mxu0 %v171
    %739 = vmatpush1.msra.mxu0 %v170
    %740 = vmatprep.subr.mxu0 %v175
    %741 = vmatpush1.msra.mxu0 %v174
    %742 = vmatprep.subr.mxu0 %v179
    %743 = vmatpush1.msra.mxu0 %v178
    %744 = vmatprep.subr.mxu0 %v183
    %745 = vmatpush1.msra.mxu0 %v182
    %746 = vmatprep.subr.mxu0 %v187
    %747 = vmatpush1.msra.mxu0 %v186
    %748 = vmatprep.mubr.f32.mxu0 %v637
    %749 = vmatmul.mubr.f32.gmra.mrb[0].mxu0 %v636
    %v750 = vpop.f32.mrb[0].mxu0
    %v751 = vadd.f32 %v579, %v750
    %v752 = vpop.f32.mrb[0].mxu0
    %v753 = vadd.f32 %v583, %v752
    %754 = vdwg.mxu0
    %755 = vmatprep.subr.mxu0 %v191
    %756 = vmatpush1.msra.mxu0 %v190
    %757 = vmatprep.subr.mxu0 %v195
    %758 = vmatpush1.msra.mxu0 %v194
    %759 = vmatprep.subr.mxu0 %v199
    %760 = vmatpush1.msra.mxu0 %v198
    %761 = vmatprep.subr.mxu0 %v203
    %762 = vmatpush1.msra.mxu0 %v202
    %763 = vmatprep.subr.mxu0 %v207
    %764 = vmatpush1.msra.mxu0 %v206
    %765 = vmatprep.subr.mxu0 %v211
    %766 = vmatpush1.msra.mxu0 %v210
    %767 = vmatprep.subr.mxu0 %v215
    %768 = vmatpush1.msra.mxu0 %v214
    %769 = vmatprep.subr.mxu0 %v219
    %770 = vmatpush1.msra.mxu0 %v218
    %771 = vmatprep.subr.mxu0 %v223
    %772 = vmatpush1.msra.mxu0 %v222
    %773 = vmatprep.subr.mxu0 %v227
    %774 = vmatpush1.msra.mxu0 %v226
    %775 = vmatprep.subr.mxu0 %v231
    %776 = vmatpush1.msra.mxu0 %v230
    %777 = vmatprep.subr.mxu0 %v235
    %778 = vmatpush1.msra.mxu0 %v234
    %779 = vmatprep.subr.mxu0 %v239
    %780 = vmatpush1.msra.mxu0 %v238
    %781 = vmatprep.subr.mxu0 %v243
    %782 = vmatpush1.msra.mxu0 %v242
    %783 = vmatprep.subr.mxu0 %v247
    %784 = vmatpush1.msra.mxu0 %v246
    %785 = vmatprep.subr.mxu0 %v251
    %786 = vmatpush1.msra.mxu0 %v250
    %787 = vmatprep.subr.mxu0 %v255
    %788 = vmatpush1.msra.mxu0 %v254
    %789 = vmatprep.subr.mxu0 %v259
    %790 = vmatpush1.msra.mxu0 %v258
    %791 = vmatprep.subr.mxu0 %v263
    %792 = vmatpush1.msra.mxu0 %v262
    %793 = vmatprep.subr.mxu0 %v267
    %794 = vmatpush1.msra.mxu0 %v266
    %795 = vmatprep.subr.mxu0 %v271
    %796 = vmatpush1.msra.mxu0 %v270
    %797 = vmatprep.subr.mxu0 %v275
    %798 = vmatpush1.msra.mxu0 %v274
    %799 = vmatprep.subr.mxu0 %v279
    %800 = vmatpush1.msra.mxu0 %v278
    %801 = vmatprep.subr.mxu0 %v283
    %802 = vmatpush1.msra.mxu0 %v282
    %803 = vmatprep.subr.mxu0 %v287
    %804 = vmatpush1.msra.mxu0 %v286
    %805 = vmatprep.subr.mxu0 %v291
    %806 = vmatpush1.msra.mxu0 %v290
    %807 = vmatprep.subr.mxu0 %v295
    %808 = vmatpush1.msra.mxu0 %v294
    %809 = vmatprep.subr.mxu0 %v299
    %810 = vmatpush1.msra.mxu0 %v298
    %811 = vmatprep.subr.mxu0 %v303
    %812 = vmatpush1.msra.mxu0 %v302
    %813 = vmatprep.subr.mxu0 %v307
    %814 = vmatpush1.msra.mxu0 %v306
    %815 = vmatprep.subr.mxu0 %v311
    %816 = vmatpush1.msra.mxu0 %v310
    %817 = vmatprep.subr.mxu0 %v315
    %818 = vmatpush1.msra.mxu0 %v314
    %819 = vmatprep.mubr.f32.mxu0 %v639
    %820 = vmatmul.mubr.f32.gmra.mrb[0].mxu0 %v638
    %v821 = vpop.f32.mrb[0].mxu0
    %v822 = vadd.f32 %v751, %v821
    %v823 = vpop.f32.mrb[0].mxu0
    %v824 = vadd.f32 %v753, %v823
    %825 = vdwg.mxu0
    %826 = vmatprep.subr.mxu0 %v319
    %827 = vmatpush1.msra.mxu0 %v318
    %828 = vmatprep.subr.mxu0 %v323
    %829 = vmatpush1.msra.mxu0 %v322
    %830 = vmatprep.subr.mxu0 %v327
    %831 = vmatpush1.msra.mxu0 %v326
    %832 = vmatprep.subr.mxu0 %v331
    %833 = vmatpush1.msra.mxu0 %v330
    %834 = vmatprep.subr.mxu0 %v335
    %835 = vmatpush1.msra.mxu0 %v334
    %836 = vmatprep.subr.mxu0 %v339
    %837 = vmatpush1.msra.mxu0 %v338
    %838 = vmatprep.subr.mxu0 %v343
    %839 = vmatpush1.msra.mxu0 %v342
    %840 = vmatprep.subr.mxu0 %v347
    %841 = vmatpush1.msra.mxu0 %v346
    %842 = vmatprep.subr.mxu0 %v351
    %843 = vmatpush1.msra.mxu0 %v350
    %844 = vmatprep.subr.mxu0 %v355
    %845 = vmatpush1.msra.mxu0 %v354
    %846 = vmatprep.subr.mxu0 %v359
    %847 = vmatpush1.msra.mxu0 %v358
    %848 = vmatprep.subr.mxu0 %v363
    %849 = vmatpush1.msra.mxu0 %v362
    %850 = vmatprep.subr.mxu0 %v367
    %851 = vmatpush1.msra.mxu0 %v366
    %852 = vmatprep.subr.mxu0 %v371
    %853 = vmatpush1.msra.mxu0 %v370
    %854 = vmatprep.subr.mxu0 %v375
    %855 = vmatpush1.msra.mxu0 %v374
    %856 = vmatprep.subr.mxu0 %v379
    %857 = vmatpush1.msra.mxu0 %v378
    %858 = vmatprep.subr.mxu0 %v383
    %859 = vmatpush1.msra.mxu0 %v382
    %860 = vmatprep.subr.mxu0 %v387
    %861 = vmatpush1.msra.mxu0 %v386
    %862 = vmatprep.subr.mxu0 %v391
    %863 = vmatpush1.msra.mxu0 %v390
    %864 = vmatprep.subr.mxu0 %v395
    %865 = vmatpush1.msra.mxu0 %v394
    %866 = vmatprep.subr.mxu0 %v399
    %867 = vmatpush1.msra.mxu0 %v398
    %868 = vmatprep.subr.mxu0 %v403
    %869 = vmatpush1.msra.mxu0 %v402
    %870 = vmatprep.subr.mxu0 %v407
    %871 = vmatpush1.msra.mxu0 %v406
    %872 = vmatprep.subr.mxu0 %v411
    %873 = vmatpush1.msra.mxu0 %v410
    %874 = vmatprep.subr.mxu0 %v415
    %875 = vmatpush1.msra.mxu0 %v414
    %876 = vmatprep.subr.mxu0 %v419
    %877 = vmatpush1.msra.mxu0 %v418
    %878 = vmatprep.subr.mxu0 %v423
    %879 = vmatpush1.msra.mxu0 %v422
    %880 = vmatprep.subr.mxu0 %v427
    %881 = vmatpush1.msra.mxu0 %v426
    %882 = vmatprep.subr.mxu0 %v431
    %883 = vmatpush1.msra.mxu0 %v430
    %884 = vmatprep.subr.mxu0 %v435
    %885 = vmatpush1.msra.mxu0 %v434
    %886 = vmatprep.subr.mxu0 %v439
    %887 = vmatpush1.msra.mxu0 %v438
    %888 = vmatprep.subr.mxu0 %v443
    %889 = vmatpush1.msra.mxu0 %v442
    %890 = vmatprep.mubr.f32.mxu0 %v673
    %891 = vmatmul.mubr.f32.gmra.mrb[0].mxu0 %v672
    %v892 = vpop.f32.mrb[0].mxu0
    %v893 = vadd.f32 %v822, %v892
    %v894 = vpop.f32.mrb[0].mxu0
    %v895 = vadd.f32 %v824, %v894
    %896 = vdwg.mxu0
    %897 = vmatprep.subr.mxu0 %v447
    %898 = vmatpush1.msra.mxu0 %v446
    %899 = vmatprep.subr.mxu0 %v451
    %900 = vmatpush1.msra.mxu0 %v450
    %901 = vmatprep.subr.mxu0 %v455
    %902 = vmatpush1.msra.mxu0 %v454
    %903 = vmatprep.subr.mxu0 %v459
    %904 = vmatpush1.msra.mxu0 %v458
    %905 = vmatprep.subr.mxu0 %v463
    %906 = vmatpush1.msra.mxu0 %v462
    %907 = vmatprep.subr.mxu0 %v467
    %908 = vmatpush1.msra.mxu0 %v466
    %909 = vmatprep.subr.mxu0 %v471
    %910 = vmatpush1.msra.mxu0 %v470
    %911 = vmatprep.subr.mxu0 %v475
    %912 = vmatpush1.msra.mxu0 %v474
    %913 = vmatprep.subr.mxu0 %v479
    %914 = vmatpush1.msra.mxu0 %v478
    %915 = vmatprep.subr.mxu0 %v483
    %916 = vmatpush1.msra.mxu0 %v482
    %917 = vmatprep.subr.mxu0 %v487
    %918 = vmatpush1.msra.mxu0 %v486
    %919 = vmatprep.subr.mxu0 %v491
    %920 = vmatpush1.msra.mxu0 %v490
    %921 = vmatprep.subr.mxu0 %v495
    %922 = vmatpush1.msra.mxu0 %v494
    %923 = vmatprep.subr.mxu0 %v499
    %924 = vmatpush1.msra.mxu0 %v498
    %925 = vmatprep.subr.mxu0 %v503
    %926 = vmatpush1.msra.mxu0 %v502
    %927 = vmatprep.subr.mxu0 %v507
    %928 = vmatpush1.msra.mxu0 %v506
    %929 = vmatprep.subr.mxu0 %v511
    %930 = vmatpush1.msra.mxu0 %v510
    %931 = vmatprep.subr.mxu0 %v515
    %932 = vmatpush1.msra.mxu0 %v514
    %933 = vmatprep.subr.mxu0 %v519
    %934 = vmatpush1.msra.mxu0 %v518
    %935 = vmatprep.subr.mxu0 %v523
    %936 = vmatpush1.msra.mxu0 %v522
    %937 = vmatprep.subr.mxu0 %v527
    %938 = vmatpush1.msra.mxu0 %v526
    %939 = vmatprep.subr.mxu0 %v531
    %940 = vmatpush1.msra.mxu0 %v530
    %941 = vmatprep.subr.mxu0 %v535
    %942 = vmatpush1.msra.mxu0 %v534
    %943 = vmatprep.subr.mxu0 %v539
    %944 = vmatpush1.msra.mxu0 %v538
    %945 = vmatprep.subr.mxu0 %v543
    %946 = vmatpush1.msra.mxu0 %v542
    %947 = vmatprep.subr.mxu0 %v547
    %948 = vmatpush1.msra.mxu0 %v546
    %949 = vmatprep.subr.mxu0 %v551
    %950 = vmatpush1.msra.mxu0 %v550
    %951 = vmatprep.subr.mxu0 %v555
    %952 = vmatpush1.msra.mxu0 %v554
    %953 = vmatprep.subr.mxu0 %v559
    %954 = vmatpush1.msra.mxu0 %v558
    %955 = vmatprep.subr.mxu0 %v563
    %956 = vmatpush1.msra.mxu0 %v562
    %957 = vmatprep.subr.mxu0 %v567
    %958 = vmatpush1.msra.mxu0 %v566
    %959 = vmatprep.subr.mxu0 %v571
    %960 = vmatpush1.msra.mxu0 %v570
    %961 = vmatprep.mubr.f32.mxu0 %v675
    %962 = vmatmul.mubr.f32.gmra.mrb[0].mxu0 %v674
    %v963 = vpop.f32.mrb[0].mxu0
    %v964 = vadd.f32 %v893, %v963
    %v965 = vpop.f32.mrb[0].mxu0
    %v966 = vadd.f32 %v895, %v965
    %967 = vdwg.mxu0
    %968 = vmatprep.subr.mxu0 %v65
    %969 = vmatpush1.msra.mxu0 %v64
    %970 = vmatprep.subr.mxu0 %v69
    %971 = vmatpush1.msra.mxu0 %v68
    %972 = vmatprep.subr.mxu0 %v73
    %973 = vmatpush1.msra.mxu0 %v72
    %974 = vmatprep.subr.mxu0 %v77
    %975 = vmatpush1.msra.mxu0 %v76
    %976 = vmatprep.subr.mxu0 %v81
    %977 = vmatpush1.msra.mxu0 %v80
    %978 = vmatprep.subr.mxu0 %v85
    %979 = vmatpush1.msra.mxu0 %v84
    %980 = vmatprep.subr.mxu0 %v89
    %981 = vmatpush1.msra.mxu0 %v88
    %982 = vmatprep.subr.mxu0 %v93
    %983 = vmatpush1.msra.mxu0 %v92
    %984 = vmatprep.subr.mxu0 %v97
    %985 = vmatpush1.msra.mxu0 %v96
    %986 = vmatprep.subr.mxu0 %v101
    %987 = vmatpush1.msra.mxu0 %v100
    %988 = vmatprep.subr.mxu0 %v105
    %989 = vmatpush1.msra.mxu0 %v104
    %990 = vmatprep.subr.mxu0 %v109
    %991 = vmatpush1.msra.mxu0 %v108
    %992 = vmatprep.subr.mxu0 %v113
    %993 = vmatpush1.msra.mxu0 %v112
    %994 = vmatprep.subr.mxu0 %v117
    %995 = vmatpush1.msra.mxu0 %v116
    %996 = vmatprep.subr.mxu0 %v121
    %997 = vmatpush1.msra.mxu0 %v120
    %998 = vmatprep.subr.mxu0 %v125
    %999 = vmatpush1.msra.mxu0 %v124
    %1000 = vmatprep.subr.mxu0 %v129
    %1001 = vmatpush1.msra.mxu0 %v128
    %1002 = vmatprep.subr.mxu0 %v133
    %1003 = vmatpush1.msra.mxu0 %v132
    %1004 = vmatprep.subr.mxu0 %v137
    %1005 = vmatpush1.msra.mxu0 %v136
    %1006 = vmatprep.subr.mxu0 %v141
    %1007 = vmatpush1.msra.mxu0 %v140
    %1008 = vmatprep.subr.mxu0 %v145
    %1009 = vmatpush1.msra.mxu0 %v144
    %1010 = vmatprep.subr.mxu0 %v149
    %1011 = vmatpush1.msra.mxu0 %v148
    %1012 = vmatprep.subr.mxu0 %v153
    %1013 = vmatpush1.msra.mxu0 %v152
    %1014 = vmatprep.subr.mxu0 %v157
    %1015 = vmatpush1.msra.mxu0 %v156
    %1016 = vmatprep.subr.mxu0 %v161
    %1017 = vmatpush1.msra.mxu0 %v160
    %1018 = vmatprep.subr.mxu0 %v165
    %1019 = vmatpush1.msra.mxu0 %v164
    %1020 = vmatprep.subr.mxu0 %v169
    %1021 = vmatpush1.msra.mxu0 %v168
    %1022 = vmatprep.subr.mxu0 %v173
    %1023 = vmatpush1.msra.mxu0 %v172
    %1024 = vmatprep.subr.mxu0 %v177
    %1025 = vmatpush1.msra.mxu0 %v176
    %1026 = vmatprep.subr.mxu0 %v181
    %1027 = vmatpush1.msra.mxu0 %v180
    %1028 = vmatprep.subr.mxu0 %v185
    %1029 = vmatpush1.msra.mxu0 %v184
    %1030 = vmatprep.subr.mxu0 %v189
    %1031 = vmatpush1.msra.mxu0 %v188
    %1032 = vmatprep.mubr.f32.mxu0 %v637
    %1033 = vmatmul.mubr.f32.gmra.mrb[0].mxu0 %v636
    %v1034 = vpop.f32.mrb[0].mxu0
    %v1035 = vadd.f32 %v587, %v1034
    %v1036 = vpop.f32.mrb[0].mxu0
    %v1037 = vadd.f32 %v591, %v1036
    %1038 = vdwg.mxu0
    %1039 = vmatprep.subr.mxu0 %v193
    %1040 = vmatpush1.msra.mxu0 %v192
    %1041 = vmatprep.subr.mxu0 %v197
    %1042 = vmatpush1.msra.mxu0 %v196
    %1043 = vmatprep.subr.mxu0 %v201
    %1044 = vmatpush1.msra.mxu0 %v200
    %1045 = vmatprep.subr.mxu0 %v205
    %1046 = vmatpush1.msra.mxu0 %v204
    %1047 = vmatprep.subr.mxu0 %v209
    %1048 = vmatpush1.msra.mxu0 %v208
    %1049 = vmatprep.subr.mxu0 %v213
    %1050 = vmatpush1.msra.mxu0 %v212
    %1051 = vmatprep.subr.mxu0 %v217
    %1052 = vmatpush1.msra.mxu0 %v216
    %1053 = vmatprep.subr.mxu0 %v221
    %1054 = vmatpush1.msra.mxu0 %v220
    %1055 = vmatprep.subr.mxu0 %v225
    %1056 = vmatpush1.msra.mxu0 %v224
    %1057 = vmatprep.subr.mxu0 %v229
    %1058 = vmatpush1.msra.mxu0 %v228
    %1059 = vmatprep.subr.mxu0 %v233
    %1060 = vmatpush1.msra.mxu0 %v232
    %1061 = vmatprep.subr.mxu0 %v237
    %1062 = vmatpush1.msra.mxu0 %v236
    %1063 = vmatprep.subr.mxu0 %v241
    %1064 = vmatpush1.msra.mxu0 %v240
    %1065 = vmatprep.subr.mxu0 %v245
    %1066 = vmatpush1.msra.mxu0 %v244
    %1067 = vmatprep.subr.mxu0 %v249
    %1068 = vmatpush1.msra.mxu0 %v248
    %1069 = vmatprep.subr.mxu0 %v253
    %1070 = vmatpush1.msra.mxu0 %v252
    %1071 = vmatprep.subr.mxu0 %v257
    %1072 = vmatpush1.msra.mxu0 %v256
    %1073 = vmatprep.subr.mxu0 %v261
    %1074 = vmatpush1.msra.mxu0 %v260
    %1075 = vmatprep.subr.mxu0 %v265
    %1076 = vmatpush1.msra.mxu0 %v264
    %1077 = vmatprep.subr.mxu0 %v269
    %1078 = vmatpush1.msra.mxu0 %v268
    %1079 = vmatprep.subr.mxu0 %v273
    %1080 = vmatpush1.msra.mxu0 %v272
    %1081 = vmatprep.subr.mxu0 %v277
    %1082 = vmatpush1.msra.mxu0 %v276
    %1083 = vmatprep.subr.mxu0 %v281
    %1084 = vmatpush1.msra.mxu0 %v280
    %1085 = vmatprep.subr.mxu0 %v285
    %1086 = vmatpush1.msra.mxu0 %v284
    %1087 = vmatprep.subr.mxu0 %v289
    %1088 = vmatpush1.msra.mxu0 %v288
    %1089 = vmatprep.subr.mxu0 %v293
    %1090 = vmatpush1.msra.mxu0 %v292
    %1091 = vmatprep.subr.mxu0 %v297
    %1092 = vmatpush1.msra.mxu0 %v296
    %1093 = vmatprep.subr.mxu0 %v301
    %1094 = vmatpush1.msra.mxu0 %v300
    %1095 = vmatprep.subr.mxu0 %v305
    %1096 = vmatpush1.msra.mxu0 %v304
    %1097 = vmatprep.subr.mxu0 %v309
    %1098 = vmatpush1.msra.mxu0 %v308
    %1099 = vmatprep.subr.mxu0 %v313
    %1100 = vmatpush1.msra.mxu0 %v312
    %1101 = vmatprep.subr.mxu0 %v317
    %1102 = vmatpush1.msra.mxu0 %v316
    %1103 = vmatprep.mubr.f32.mxu0 %v639
    %1104 = vmatmul.mubr.f32.gmra.mrb[0].mxu0 %v638
    %v1105 = vpop.f32.mrb[0].mxu0
    %v1106 = vadd.f32 %v1035, %v1105
    %v1107 = vpop.f32.mrb[0].mxu0
    %v1108 = vadd.f32 %v1037, %v1107
    %1109 = vdwg.mxu0
    %1110 = vmatprep.subr.mxu0 %v321
    %1111 = vmatpush1.msra.mxu0 %v320
    %1112 = vmatprep.subr.mxu0 %v325
    %1113 = vmatpush1.msra.mxu0 %v324
    %1114 = vmatprep.subr.mxu0 %v329
    %1115 = vmatpush1.msra.mxu0 %v328
    %1116 = vmatprep.subr.mxu0 %v333
    %1117 = vmatpush1.msra.mxu0 %v332
    %1118 = vmatprep.subr.mxu0 %v337
    %1119 = vmatpush1.msra.mxu0 %v336
    %1120 = vmatprep.subr.mxu0 %v341
    %1121 = vmatpush1.msra.mxu0 %v340
    %1122 = vmatprep.subr.mxu0 %v345
    %1123 = vmatpush1.msra.mxu0 %v344
    %1124 = vmatprep.subr.mxu0 %v349
    %1125 = vmatpush1.msra.mxu0 %v348
    %1126 = vmatprep.subr.mxu0 %v353
    %1127 = vmatpush1.msra.mxu0 %v352
    %1128 = vmatprep.subr.mxu0 %v357
    %1129 = vmatpush1.msra.mxu0 %v356
    %1130 = vmatprep.subr.mxu0 %v361
    %1131 = vmatpush1.msra.mxu0 %v360
    %1132 = vmatprep.subr.mxu0 %v365
    %1133 = vmatpush1.msra.mxu0 %v364
    %1134 = vmatprep.subr.mxu0 %v369
    %1135 = vmatpush1.msra.mxu0 %v368
    %1136 = vmatprep.subr.mxu0 %v373
    %1137 = vmatpush1.msra.mxu0 %v372
    %1138 = vmatprep.subr.mxu0 %v377
    %1139 = vmatpush1.msra.mxu0 %v376
    %1140 = vmatprep.subr.mxu0 %v381
    %1141 = vmatpush1.msra.mxu0 %v380
    %1142 = vmatprep.subr.mxu0 %v385
    %1143 = vmatpush1.msra.mxu0 %v384
    %1144 = vmatprep.subr.mxu0 %v389
    %1145 = vmatpush1.msra.mxu0 %v388
    %1146 = vmatprep.subr.mxu0 %v393
    %1147 = vmatpush1.msra.mxu0 %v392
    %1148 = vmatprep.subr.mxu0 %v397
    %1149 = vmatpush1.msra.mxu0 %v396
    %1150 = vmatprep.subr.mxu0 %v401
    %1151 = vmatpush1.msra.mxu0 %v400
    %1152 = vmatprep.subr.mxu0 %v405
    %1153 = vmatpush1.msra.mxu0 %v404
    %1154 = vmatprep.subr.mxu0 %v409
    %1155 = vmatpush1.msra.mxu0 %v408
    %1156 = vmatprep.subr.mxu0 %v413
    %1157 = vmatpush1.msra.mxu0 %v412
    %1158 = vmatprep.subr.mxu0 %v417
    %1159 = vmatpush1.msra.mxu0 %v416
    %1160 = vmatprep.subr.mxu0 %v421
    %1161 = vmatpush1.msra.mxu0 %v420
    %1162 = vmatprep.subr.mxu0 %v425
    %1163 = vmatpush1.msra.mxu0 %v424
    %1164 = vmatprep.subr.mxu0 %v429
    %1165 = vmatpush1.msra.mxu0 %v428
    %1166 = vmatprep.subr.mxu0 %v433
    %1167 = vmatpush1.msra.mxu0 %v432
    %1168 = vmatprep.subr.mxu0 %v437
    %1169 = vmatpush1.msra.mxu0 %v436
    %1170 = vmatprep.subr.mxu0 %v441
    %1171 = vmatpush1.msra.mxu0 %v440
    %1172 = vmatprep.subr.mxu0 %v445
    %1173 = vmatpush1.msra.mxu0 %v444
    %1174 = vmatprep.mubr.f32.mxu0 %v673
    %1175 = vmatmul.mubr.f32.gmra.mrb[0].mxu0 %v672
    %v1176 = vpop.f32.mrb[0].mxu0
    %v1177 = vadd.f32 %v1106, %v1176
    %v1178 = vpop.f32.mrb[0].mxu0
    %v1179 = vadd.f32 %v1108, %v1178
    %1180 = vdwg.mxu0
    %1181 = vmatprep.subr.mxu0 %v449
    %1182 = vmatpush1.msra.mxu0 %v448
    %1183 = vmatprep.subr.mxu0 %v453
    %1184 = vmatpush1.msra.mxu0 %v452
    %1185 = vmatprep.subr.mxu0 %v457
    %1186 = vmatpush1.msra.mxu0 %v456
    %1187 = vmatprep.subr.mxu0 %v461
    %1188 = vmatpush1.msra.mxu0 %v460
    %1189 = vmatprep.subr.mxu0 %v465
    %1190 = vmatpush1.msra.mxu0 %v464
    %1191 = vmatprep.subr.mxu0 %v469
    %1192 = vmatpush1.msra.mxu0 %v468
    %1193 = vmatprep.subr.mxu0 %v473
    %1194 = vmatpush1.msra.mxu0 %v472
    %1195 = vmatprep.subr.mxu0 %v477
    %1196 = vmatpush1.msra.mxu0 %v476
    %1197 = vmatprep.subr.mxu0 %v481
    %1198 = vmatpush1.msra.mxu0 %v480
    %1199 = vmatprep.subr.mxu0 %v485
    %1200 = vmatpush1.msra.mxu0 %v484
    %1201 = vmatprep.subr.mxu0 %v489
    %1202 = vmatpush1.msra.mxu0 %v488
    %1203 = vmatprep.subr.mxu0 %v493
    %1204 = vmatpush1.msra.mxu0 %v492
    %1205 = vmatprep.subr.mxu0 %v497
    %1206 = vmatpush1.msra.mxu0 %v496
    %1207 = vmatprep.subr.mxu0 %v501
    %1208 = vmatpush1.msra.mxu0 %v500
    %1209 = vmatprep.subr.mxu0 %v505
    %1210 = vmatpush1.msra.mxu0 %v504
    %1211 = vmatprep.subr.mxu0 %v509
    %1212 = vmatpush1.msra.mxu0 %v508
    %1213 = vmatprep.subr.mxu0 %v513
    %1214 = vmatpush1.msra.mxu0 %v512
    %1215 = vmatprep.subr.mxu0 %v517
    %1216 = vmatpush1.msra.mxu0 %v516
    %1217 = vmatprep.subr.mxu0 %v521
    %1218 = vmatpush1.msra.mxu0 %v520
    %1219 = vmatprep.subr.mxu0 %v525
    %1220 = vmatpush1.msra.mxu0 %v524
    %1221 = vmatprep.subr.mxu0 %v529
    %1222 = vmatpush1.msra.mxu0 %v528
    %1223 = vmatprep.subr.mxu0 %v533
    %1224 = vmatpush1.msra.mxu0 %v532
    %1225 = vmatprep.subr.mxu0 %v537
    %1226 = vmatpush1.msra.mxu0 %v536
    %1227 = vmatprep.subr.mxu0 %v541
    %1228 = vmatpush1.msra.mxu0 %v540
    %1229 = vmatprep.subr.mxu0 %v545
    %1230 = vmatpush1.msra.mxu0 %v544
    %1231 = vmatprep.subr.mxu0 %v549
    %1232 = vmatpush1.msra.mxu0 %v548
    %1233 = vmatprep.subr.mxu0 %v553
    %1234 = vmatpush1.msra.mxu0 %v552
    %1235 = vmatprep.subr.mxu0 %v557
    %1236 = vmatpush1.msra.mxu0 %v556
    %1237 = vmatprep.subr.mxu0 %v561
    %1238 = vmatpush1.msra.mxu0 %v560
    %1239 = vmatprep.subr.mxu0 %v565
    %1240 = vmatpush1.msra.mxu0 %v564
    %1241 = vmatprep.subr.mxu0 %v569
    %1242 = vmatpush1.msra.mxu0 %v568
    %1243 = vmatprep.subr.mxu0 %v573
    %1244 = vmatpush1.msra.mxu0 %v572
    %1245 = vmatprep.mubr.f32.mxu0 %v675
    %1246 = vmatmul.mubr.f32.gmra.mrb[0].mxu0 %v674
    %v1247 = vpop.f32.mrb[0].mxu0
    %v1248 = vadd.f32 %v1177, %v1247
    %v1249 = vpop.f32.mrb[0].mxu0
    %v1250 = vadd.f32 %v1179, %v1249
    %1251 = vdwg.mxu0
    %v1252 = vmax.f32 %v964, 0.0
    %v1253 = vmax.f32 %v966, 0.0
    %v1254 = vmax.f32 %v1248, 0.0
    %v1255 = vmax.f32 %v1250, 0.0
    %v1256 = vld [vmem:[%s3] sm:$0xff]
    %v1257 = vld [vmem:[%s3 + $0x8] sm:$0xff]
    %v1258 = vld [vmem:[%s3 + $0x10] sm:$0xff]
    %v1259 = vld [vmem:[%s3 + $0x18] sm:$0xff]
    %v1260 = vld [vmem:[%s3 + $0x20] sm:$0xff]
    %v1261 = vld [vmem:[%s3 + $0x28] sm:$0xff]
    %v1262 = vld [vmem:[%s3 + $0x30] sm:$0xff]
    %v1263 = vld [vmem:[%s3 + $0x38] sm:$0xff]
    %v1264 = vld [vmem:[%s3 + $0x40] sm:$0xff]
    %v1265 = vld [vmem:[%s3 + $0x48] sm:$0xff]
    %v1266 = vld [vmem:[%s3 + $0x50] sm:$0xff]
    %v1267 = vld [vmem:[%s3 + $0x58] sm:$0xff]
    %v1268 = vld [vmem:[%s3 + $0x60] sm:$0xff]
    %v1269 = vld [vmem:[%s3 + $0x68] sm:$0xff]
    %v1270 = vld [vmem:[%s3 + $0x70] sm:$0xff]
    %v1271 = vld [vmem:[%s3 + $0x78] sm:$0xff]
    %v1272 = vld [vmem:[%s3 + $0x80] sm:$0xff]
    %v1273 = vld [vmem:[%s3 + $0x88] sm:$0xff]
    %v1274 = vld [vmem:[%s3 + $0x90] sm:$0xff]
    %v1275 = vld [vmem:[%s3 + $0x98] sm:$0xff]
    %v1276 = vld [vmem:[%s3 + $0xa0] sm:$0xff]
    %v1277 = vld [vmem:[%s3 + $0xa8] sm:$0xff]
    %v1278 = vld [vmem:[%s3 + $0xb0] sm:$0xff]
    %v1279 = vld [vmem:[%s3 + $0xb8] sm:$0xff]
    %v1280 = vld [vmem:[%s3 + $0xc0] sm:$0xff]
    %v1281 = vld [vmem:[%s3 + $0xc8] sm:$0xff]
    %v1282 = vld [vmem:[%s3 + $0xd0] sm:$0xff]
    %v1283 = vld [vmem:[%s3 + $0xd8] sm:$0xff]
    %v1284 = vld [vmem:[%s3 + $0xe0] sm:$0xff]
    %v1285 = vld [vmem:[%s3 + $0xe8] sm:$0xff]
    %v1286 = vld [vmem:[%s3 + $0xf0] sm:$0xff]
    %v1287 = vld [vmem:[%s3 + $0xf8] sm:$0xff]
    %v1288 = vld [vmem:[%s3 + $0x100] sm:$0xff]
    %v1289 = vld [vmem:[%s3 + $0x108] sm:$0xff]
    %v1290 = vld [vmem:[%s3 + $0x110] sm:$0xff]
    %v1291 = vld [vmem:[%s3 + $0x118] sm:$0xff]
    %v1292 = vld [vmem:[%s3 + $0x120] sm:$0xff]
    %v1293 = vld [vmem:[%s3 + $0x128] sm:$0xff]
    %v1294 = vld [vmem:[%s3 + $0x130] sm:$0xff]
    %v1295 = vld [vmem:[%s3 + $0x138] sm:$0xff]
    %v1296 = vld [vmem:[%s3 + $0x140] sm:$0xff]
    %v1297 = vld [vmem:[%s3 + $0x148] sm:$0xff]
    %v1298 = vld [vmem:[%s3 + $0x150] sm:$0xff]
    %v1299 = vld [vmem:[%s3 + $0x158] sm:$0xff]
    %v1300 = vld [vmem:[%s3 + $0x160] sm:$0xff]
    %v1301 = vld [vmem:[%s3 + $0x168] sm:$0xff]
    %v1302 = vld [vmem:[%s3 + $0x170] sm:$0xff]
    %v1303 = vld [vmem:[%s3 + $0x178] sm:$0xff]
    %v1304 = vld [vmem:[%s3 + $0x180] sm:$0xff]
    %v1305 = vld [vmem:[%s3 + $0x188] sm:$0xff]
    %v1306 = vld [vmem:[%s3 + $0x190] sm:$0xff]
    %v1307 = vld [vmem:[%s3 + $0x198] sm:$0xff]
    %v1308 = vld [vmem:[%s3 + $0x1a0] sm:$0xff]
    %v1309 = vld [vmem:[%s3 + $0x1a8] sm:$0xff]
    %v1310 = vld [vmem:[%s3 + $0x1b0] sm:$0xff]
    %v1311 = vld [vmem:[%s3 + $0x1b8] sm:$0xff]
    %v1312 = vld [vmem:[%s3 + $0x1c0] sm:$0xff]
    %v1313 = vld [vmem:[%s3 + $0x1c8] sm:$0xff]
    %v1314 = vld [vmem:[%s3 + $0x1d0] sm:$0xff]
    %v1315 = vld [vmem:[%s3 + $0x1d8] sm:$0xff]
    %v1316 = vld [vmem:[%s3 + $0x1e0] sm:$0xff]
    %v1317 = vld [vmem:[%s3 + $0x1e8] sm:$0xff]
    %v1318 = vld [vmem:[%s3 + $0x1f0] sm:$0xff]
    %v1319 = vld [vmem:[%s3 + $0x1f8] sm:$0xff]
    %v1320 = vld [vmem:[%s3 + $0x200] sm:$0xff]
    %v1321 = vld [vmem:[%s3 + $0x208] sm:$0xff]
    %v1322 = vld [vmem:[%s3 + $0x210] sm:$0xff]
    %v1323 = vld [vmem:[%s3 + $0x218] sm:$0xff]
    %v1324 = vld [vmem:[%s3 + $0x220] sm:$0xff]
    %v1325 = vld [vmem:[%s3 + $0x228] sm:$0xff]
    %v1326 = vld [vmem:[%s3 + $0x230] sm:$0xff]
    %v1327 = vld [vmem:[%s3 + $0x238] sm:$0xff]
    %v1328 = vld [vmem:[%s3 + $0x240] sm:$0xff]
    %v1329 = vld [vmem:[%s3 + $0x248] sm:$0xff]
    %v1330 = vld [vmem:[%s3 + $0x250] sm:$0xff]
    %v1331 = vld [vmem:[%s3 + $0x258] sm:$0xff]
    %v1332 = vld [vmem:[%s3 + $0x260] sm:$0xff]
    %v1333 = vld [vmem:[%s3 + $0x268] sm:$0xff]
    %v1334 = vld [vmem:[%s3 + $0x270] sm:$0xff]
    %v1335 = vld [vmem:[%s3 + $0x278] sm:$0xff]
    %v1336 = vld [vmem:[%s3 + $0x280] sm:$0xff]
    %v1337 = vld [vmem:[%s3 + $0x288] sm:$0xff]
    %v1338 = vld [vmem:[%s3 + $0x290] sm:$0xff]
    %v1339 = vld [vmem:[%s3 + $0x298] sm:$0xff]
    %v1340 = vld [vmem:[%s3 + $0x2a0] sm:$0xff]
    %v1341 = vld [vmem:[%s3 + $0x2a8] sm:$0xff]
    %v1342 = vld [vmem:[%s3 + $0x2b0] sm:$0xff]
    %v1343 = vld [vmem:[%s3 + $0x2b8] sm:$0xff]
    %v1344 = vld [vmem:[%s3 + $0x2c0] sm:$0xff]
    %v1345 = vld [vmem:[%s3 + $0x2c8] sm:$0xff]
    %v1346 = vld [vmem:[%s3 + $0x2d0] sm:$0xff]
    %v1347 = vld [vmem:[%s3 + $0x2d8] sm:$0xff]
    %v1348 = vld [vmem:[%s3 + $0x2e0] sm:$0xff]
    %v1349 = vld [vmem:[%s3 + $0x2e8] sm:$0xff]
    %v1350 = vld [vmem:[%s3 + $0x2f0] sm:$0xff]
    %v1351 = vld [vmem:[%s3 + $0x2f8] sm:$0xff]
    %v1352 = vld [vmem:[%s3 + $0x300] sm:$0xff]
    %v1353 = vld [vmem:[%s3 + $0x308] sm:$0xff]
    %v1354 = vld [vmem:[%s4] sm:$0x3]
    %v1356 = vlaneseq
    %v1357 = vshrl.u32 %v1356, 7
    %v1358 = vsub.s32 0, %v1357
    %v1359 = vrot.slane %v1354, %v1358
    %v1360 = vlaneseq
    %v1361 = vshrl.u32 %v1360, 7
    %v1362 = vsub.s32 1, %v1361
    %v1363 = vrot.slane %v1354, %v1362
    %vm1366 = vcmask 64512
    %v1368 = vsel %vm1366, %v1255, 0
    %1370 = vmatprep.subr.mxu0 %v1257
    %1371 = vmatpush1.msra.mxu0 %v1256
    %1372 = vmatprep.subr.mxu0 %v1259
    %1373 = vmatpush1.msra.mxu0 %v1258
    %1374 = vmatprep.subr.mxu0 %v1261
    %1375 = vmatpush1.msra.mxu0 %v1260
    %1376 = vmatprep.subr.mxu0 %v1263
    %1377 = vmatpush1.msra.mxu0 %v1262
    %1378 = vmatprep.subr.mxu0 %v1265
    %1379 = vmatpush1.msra.mxu0 %v1264
    %1380 = vmatprep.subr.mxu0 %v1267
    %1381 = vmatpush1.msra.mxu0 %v1266
    %1382 = vmatprep.subr.mxu0 %v1269
    %1383 = vmatpush1.msra.mxu0 %v1268
    %1384 = vmatprep.subr.mxu0 %v1271
    %1385 = vmatpush1.msra.mxu0 %v1270
    %1386 = vmatprep.subr.mxu0 %v1273
    %1387 = vmatpush1.msra.mxu0 %v1272
    %1388 = vmatprep.subr.mxu0 %v1275
    %1389 = vmatpush1.msra.mxu0 %v1274
    %1390 = vmatprep.subr.mxu0 %v1277
    %1391 = vmatpush1.msra.mxu0 %v1276
    %1392 = vmatprep.subr.mxu0 %v1279
    %1393 = vmatpush1.msra.mxu0 %v1278
    %1394 = vmatprep.subr.mxu0 %v1281
    %1395 = vmatpush1.msra.mxu0 %v1280
    %1396 = vmatprep.subr.mxu0 %v1283
    %1397 = vmatpush1.msra.mxu0 %v1282
    %1398 = vmatprep.subr.mxu0 %v1285
    %1399 = vmatpush1.msra.mxu0 %v1284
    %1400 = vmatprep.subr.mxu0 %v1287
    %1401 = vmatpush1.msra.mxu0 %v1286
    %1402 = vmatprep.subr.mxu0 %v1289
    %1403 = vmatpush1.msra.mxu0 %v1288
    %1404 = vmatprep.subr.mxu0 %v1291
    %1405 = vmatpush1.msra.mxu0 %v1290
    %1406 = vmatprep.subr.mxu0 %v1293
    %1407 = vmatpush1.msra.mxu0 %v1292
    %1408 = vmatprep.subr.mxu0 %v1295
    %1409 = vmatpush1.msra.mxu0 %v1294
    %1410 = vmatprep.subr.mxu0 %v1297
    %1411 = vmatpush1.msra.mxu0 %v1296
    %1412 = vmatprep.subr.mxu0 %v1299
    %1413 = vmatpush1.msra.mxu0 %v1298
    %1414 = vmatprep.subr.mxu0 %v1301
    %1415 = vmatpush1.msra.mxu0 %v1300
    %1416 = vmatprep.subr.mxu0 %v1303
    %1417 = vmatpush1.msra.mxu0 %v1302
    %1418 = vmatprep.subr.mxu0 %v1305
    %1419 = vmatpush1.msra.mxu0 %v1304
    %1420 = vmatprep.subr.mxu0 %v1307
    %1421 = vmatpush1.msra.mxu0 %v1306
    %1422 = vmatprep.subr.mxu0 %v1309
    %1423 = vmatpush1.msra.mxu0 %v1308
    %1424 = vmatprep.subr.mxu0 %v1311
    %1425 = vmatpush1.msra.mxu0 %v1310
    %1426 = vmatprep.subr.mxu0 %v1313
    %1427 = vmatpush1.msra.mxu0 %v1312
    %1428 = vmatprep.subr.mxu0 %v1315
    %1429 = vmatpush1.msra.mxu0 %v1314
    %1430 = vmatprep.subr.mxu0 %v1317
    %1431 = vmatpush1.msra.mxu0 %v1316
    %1432 = vmatprep.subr.mxu0 %v1319
    %1433 = vmatpush1.msra.mxu0 %v1318
    %1434 = vmatprep.mubr.f32.mxu0 %v1253
    %1435 = vmatmul.mubr.f32.gmra.mrb[0].mxu0 %v1252
    %v1436 = vpop.f32.mrb[0].mxu0
    %v1437 = vadd.f32 %v1359, %v1436
    %v1438 = vpop.f32.mrb[0].mxu0
    %v1439 = vadd.f32 %v1363, %v1438
    %1440 = vdwg.mxu0
    %1441 = vmatprep.subr.mxu0 %v1321
    %1442 = vmatpush1.msra.mxu0 %v1320
    %1443 = vmatprep.subr.mxu0 %v1323
    %1444 = vmatpush1.msra.mxu0 %v1322
    %1445 = vmatprep.subr.mxu0 %v1325
    %1446 = vmatpush1.msra.mxu0 %v1324
    %1447 = vmatprep.subr.mxu0 %v1327
    %1448 = vmatpush1.msra.mxu0 %v1326
    %1449 = vmatprep.subr.mxu0 %v1329
    %1450 = vmatpush1.msra.mxu0 %v1328
    %1451 = vmatprep.subr.mxu0 %v1331
    %1452 = vmatpush1.msra.mxu0 %v1330
    %1453 = vmatprep.subr.mxu0 %v1333
    %1454 = vmatpush1.msra.mxu0 %v1332
    %1455 = vmatprep.subr.mxu0 %v1335
    %1456 = vmatpush1.msra.mxu0 %v1334
    %1457 = vmatprep.subr.mxu0 %v1337
    %1458 = vmatpush1.msra.mxu0 %v1336
    %1459 = vmatprep.subr.mxu0 %v1339
    %1460 = vmatpush1.msra.mxu0 %v1338
    %1461 = vmatprep.subr.mxu0 %v1341
    %1462 = vmatpush1.msra.mxu0 %v1340
    %1463 = vmatprep.subr.mxu0 %v1343
    %1464 = vmatpush1.msra.mxu0 %v1342
    %1465 = vmatprep.subr.mxu0 %v1345
    %1466 = vmatpush1.msra.mxu0 %v1344
    %1467 = vmatprep.subr.mxu0 %v1347
    %1468 = vmatpush1.msra.mxu0 %v1346
    %1469 = vmatprep.subr.mxu0 %v1349
    %1470 = vmatpush1.msra.mxu0 %v1348
    %1471 = vmatprep.subr.mxu0 %v1351
    %1472 = vmatpush1.msra.mxu0 %v1350
    %1473 = vmatprep.subr.mxu0 %v1353
    %1474 = vmatpush1.msra.mxu0 %v1352
    %1475 = vmatprep.subr.mxu0 0.0
    %1476 = vmatpush1.msra.mxu0 0.0
    %1477 = vmatprep.subr.mxu0 0.0
    %1478 = vmatpush1.msra.mxu0 0.0
    %1479 = vmatprep.subr.mxu0 0.0
    %1480 = vmatpush1.msra.mxu0 0.0
    %1481 = vmatprep.subr.mxu0 0.0
    %1482 = vmatpush1.msra.mxu0 0.0
    %1483 = vmatprep.subr.mxu0 0.0
    %1484 = vmatpush1.msra.mxu0 0.0
    %1485 = vmatprep.subr.mxu0 0.0
    %1486 = vmatpush1.msra.mxu0 0.0
    %1487 = vmatprep.subr.mxu0 0.0
    %1488 = vmatpush1.msra.mxu0 0.0
    %1489 = vmatprep.subr.mxu0 0.0
    %1490 = vmatpush1.msra.mxu0 0.0
    %1491 = vmatprep.subr.mxu0 0.0
    %1492 = vmatpush1.msra.mxu0 0.0
    %1493 = vmatprep.subr.mxu0 0.0
    %1494 = vmatpush1.msra.mxu0 0.0
    %1495 = vmatprep.subr.mxu0 0.0
    %1496 = vmatpush1.msra.mxu0 0.0
    %1497 = vmatprep.subr.mxu0 0.0
    %1498 = vmatpush1.msra.mxu0 0.0
    %1499 = vmatprep.subr.mxu0 0.0
    %1500 = vmatpush1.msra.mxu0 0.0
    %1501 = vmatprep.subr.mxu0 0.0
    %1502 = vmatpush1.msra.mxu0 0.0
    %1503 = vmatprep.subr.mxu0 0.0
    %1504 = vmatpush1.msra.mxu0 0.0
    %1505 = vmatprep.mubr.f32.mxu0 %v1368
    %1506 = vmatmul.mubr.f32.gmra.mrb[0].mxu0 %v1254
    %v1507 = vpop.f32.mrb[0].mxu0
    %v1508 = vadd.f32 %v1437, %v1507
    %v1509 = vpop.f32.mrb[0].mxu0
    %v1510 = vadd.f32 %v1439, %v1509
    %1511 = vdwg.mxu0
    %v1512 = vmax.f32 %v1508, 0.0
    %v1513 = vmax.f32 %v1510, 0.0
    %v1514 = vld [vmem:[%s5] sm:$0xff]
    %v1515 = vld [vmem:[%s5 + $0x8] sm:$0xff]
    %v1516 = vld [vmem:[%s5 + $0x10] sm:$0xff]
    %v1517 = vld [vmem:[%s5 + $0x18] sm:$0xff]
    %v1518 = vld [vmem:[%s5 + $0x20] sm:$0xff]
    %v1519 = vld [vmem:[%s5 + $0x28] sm:$0xff]
    %v1520 = vld [vmem:[%s5 + $0x30] sm:$0xff]
    %v1521 = vld [vmem:[%s5 + $0x38] sm:$0xff]
    %v1522 = vld [vmem:[%s5 + $0x40] sm:$0xff]
    %v1523 = vld [vmem:[%s5 + $0x48] sm:$0xff]
    %v1524 = vld [vmem:[%s5 + $0x50] sm:$0xff]
    %v1525 = vld [vmem:[%s5 + $0x58] sm:$0xff]
    %v1526 = vld [vmem:[%s5 + $0x60] sm:$0xff]
    %v1527 = vld [vmem:[%s5 + $0x68] sm:$0xff]
    %v1528 = vld [vmem:[%s5 + $0x70] sm:$0xff]
    %v1529 = vld [vmem:[%s5 + $0x78] sm:$0xff]
    %v1530 = vld [vmem:[%s5 + $0x80] sm:$0xff]
    %v1531 = vld [vmem:[%s5 + $0x88] sm:$0xff]
    %v1532 = vld [vmem:[%s5 + $0x90] sm:$0xff]
    %v1533 = vld [vmem:[%s5 + $0x98] sm:$0xff]
    %v1534 = vld [vmem:[%s5 + $0xa0] sm:$0xff]
    %v1535 = vld [vmem:[%s5 + $0xa8] sm:$0xff]
    %v1536 = vld [vmem:[%s5 + $0xb0] sm:$0xff]
    %v1537 = vld [vmem:[%s5 + $0xb8] sm:$0xff]
    %v1538 = vld [vmem:[%s5 + $0xc0] sm:$0xff]
    %v1539 = vld [vmem:[%s6] sm:$0x1]
    %v1541 = vlaneseq
    %v1542 = vshrl.u32 %v1541, 7
    %v1543 = vsub.s32 0, %v1542
    %v1544 = vrot.slane %v1539, %v1543
    %vm1546 = vcmask 588800
    %v1548 = vsel %vm1546, %v1513, 0
    %1550 = vmatprep.subr.mxu0 0.0
    %1551 = vmatpush1.msra.mxu0 %v1514
    %1552 = vmatprep.subr.mxu0 0.0
    %1553 = vmatpush1.msra.mxu0 %v1515
    %1554 = vmatprep.subr.mxu0 0.0
    %1555 = vmatpush1.msra.mxu0 %v1516
    %1556 = vmatprep.subr.mxu0 0.0
    %1557 = vmatpush1.msra.mxu0 %v1517
    %1558 = vmatprep.subr.mxu0 0.0
    %1559 = vmatpush1.msra.mxu0 %v1518
    %1560 = vmatprep.subr.mxu0 0.0
    %1561 = vmatpush1.msra.mxu0 %v1519
    %1562 = vmatprep.subr.mxu0 0.0
    %1563 = vmatpush1.msra.mxu0 %v1520
    %1564 = vmatprep.subr.mxu0 0.0
    %1565 = vmatpush1.msra.mxu0 %v1521
    %1566 = vmatprep.subr.mxu0 0.0
    %1567 = vmatpush1.msra.mxu0 %v1522
    %1568 = vmatprep.subr.mxu0 0.0
    %1569 = vmatpush1.msra.mxu0 %v1523
    %1570 = vmatprep.subr.mxu0 0.0
    %1571 = vmatpush1.msra.mxu0 %v1524
    %1572 = vmatprep.subr.mxu0 0.0
    %1573 = vmatpush1.msra.mxu0 %v1525
    %1574 = vmatprep.subr.mxu0 0.0
    %1575 = vmatpush1.msra.mxu0 %v1526
    %1576 = vmatprep.subr.mxu0 0.0
    %1577 = vmatpush1.msra.mxu0 %v1527
    %1578 = vmatprep.subr.mxu0 0.0
    %1579 = vmatpush1.msra.mxu0 %v1528
    %1580 = vmatprep.subr.mxu0 0.0
    %1581 = vmatpush1.msra.mxu0 %v1529
    %1582 = vmatprep.subr.mxu0 0.0
    %1583 = vmatpush1.msra.mxu0 %v1530
    %1584 = vmatprep.subr.mxu0 0.0
    %1585 = vmatpush1.msra.mxu0 %v1531
    %1586 = vmatprep.subr.mxu0 0.0
    %1587 = vmatpush1.msra.mxu0 %v1532
    %1588 = vmatprep.subr.mxu0 0.0
    %1589 = vmatpush1.msra.mxu0 %v1533
    %1590 = vmatprep.subr.mxu0 0.0
    %1591 = vmatpush1.msra.mxu0 %v1534
    %1592 = vmatprep.subr.mxu0 0.0
    %1593 = vmatpush1.msra.mxu0 %v1535
    %1594 = vmatprep.subr.mxu0 0.0
    %1595 = vmatpush1.msra.mxu0 %v1536
    %1596 = vmatprep.subr.mxu0 0.0
    %1597 = vmatpush1.msra.mxu0 %v1537
    %1598 = vmatprep.subr.mxu0 0.0
    %1599 = vmatpush1.msra.mxu0 %v1538
    %1600 = vmatprep.subr.mxu0 0.0
    %1601 = vmatpush1.msra.mxu0 0.0
    %1602 = vmatprep.subr.mxu0 0.0
    %1603 = vmatpush1.msra.mxu0 0.0
    %1604 = vmatprep.subr.mxu0 0.0
    %1605 = vmatpush1.msra.mxu0 0.0
    %1606 = vmatprep.subr.mxu0 0.0
    %1607 = vmatpush1.msra.mxu0 0.0
    %1608 = vmatprep.subr.mxu0 0.0
    %1609 = vmatpush1.msra.mxu0 0.0
    %1610 = vmatprep.subr.mxu0 0.0
    %1611 = vmatpush1.msra.mxu0 0.0
    %1612 = vmatprep.subr.mxu0 0.0
    %1613 = vmatpush1.msra.mxu0 0.0
    %1614 = vmatprep.mubr.f32.mxu0 %v1548
    %1615 = vmatmul.mubr.f32.gmra.mrb[0].mxu0 %v1512
    %v1616 = vpop.f32.mrb[0].mxu0
    %v1617 = vadd.f32 %v1544, %v1616
    %v1618 = vpop.f32.mrb[0].mxu0
    %1619 = vdwg.mxu0
    %vm1620 = vcmask 130048
    %v1621 = vsel %vm1620, %v1617, 0.0
    %1622 = vadd.xlane.f32.xlu0 %v1621
    %v1623 = vpop.xlane.xlu0 %1622
    %v1624 = vrcp.pop 16.0
    %v1625 = vmul.f32 %v1623, %v1624
    %v1626 = vsub.f32 %v1617, %v1625
    %v1627 = vmul.f32 %v1626, %v1626
    %v1628 = vsel %vm1620, %v1627, 0.0
    %1629 = vadd.xlane.f32.xlu0 %v1628
    %v1630 = vpop.xlane.xlu0 %1629
    %v1631 = vmul.f32 %v1630, %v1624
    %v1632 = vadd.f32 %v1631, 1e-05
    %v1633 = vrsqrt.pop %v1632
    %v1634 = vmul.f32 %v1626, %v1633
    %v1635 = vld [vmem:[%s7] sm:$0x1]
    %v1637 = vlaneseq
    %v1638 = vshrl.u32 %v1637, 7
    %v1639 = vsub.s32 0, %v1638
    %v1640 = vrot.slane %v1635, %v1639
    %v1642 = vmul.f32 %v1634, %v1640
    %v1643 = vld [vmem:[%s8] sm:$0x1]
    %v1645 = vlaneseq
    %v1646 = vshrl.u32 %v1645, 7
    %v1647 = vsub.s32 0, %v1646
    %v1648 = vrot.slane %v1643, %v1647
    %v1650 = vadd.f32 %v1642, %v1648
    %v1651 = vtanh.pop %v1650
    %v1652 = vld [vmem:[%s9] sm:$0xff]
    %v1653 = vld [vmem:[%s9 + $0x8] sm:$0xff]
    %v1654 = vld [vmem:[%s10] sm:$0x1]
    %v1656 = vlaneseq
    %v1657 = vshrl.u32 %v1656, 7
    %v1658 = vsub.s32 0, %v1657
    %v1659 = vrot.slane %v1654, %v1658
    %v1662 = vsel %vm1620, %v1651, 0
    %1664 = vmatprep.subr.mxu0 0.0
    %1665 = vmatpush1.msra.mxu0 %v1652
    %1666 = vmatprep.subr.mxu0 0.0
    %1667 = vmatpush1.msra.mxu0 %v1653
    %1668 = vmatprep.subr.mxu0 0.0
    %1669 = vmatpush1.msra.mxu0 0.0
    %1670 = vmatprep.subr.mxu0 0.0
    %1671 = vmatpush1.msra.mxu0 0.0
    %1672 = vmatprep.subr.mxu0 0.0
    %1673 = vmatpush1.msra.mxu0 0.0
    %1674 = vmatprep.subr.mxu0 0.0
    %1675 = vmatpush1.msra.mxu0 0.0
    %1676 = vmatprep.subr.mxu0 0.0
    %1677 = vmatpush1.msra.mxu0 0.0
    %1678 = vmatprep.subr.mxu0 0.0
    %1679 = vmatpush1.msra.mxu0 0.0
    %1680 = vmatprep.subr.mxu0 0.0
    %1681 = vmatpush1.msra.mxu0 0.0
    %1682 = vmatprep.subr.mxu0 0.0
    %1683 = vmatpush1.msra.mxu0 0.0
    %1684 = vmatprep.subr.mxu0 0.0
    %1685 = vmatpush1.msra.mxu0 0.0
    %1686 = vmatprep.subr.mxu0 0.0
    %1687 = vmatpush1.msra.mxu0 0.0
    %1688 = vmatprep.subr.mxu0 0.0
    %1689 = vmatpush1.msra.mxu0 0.0
    %1690 = vmatprep.subr.mxu0 0.0
    %1691 = vmatpush1.msra.mxu0 0.0
    %1692 = vmatprep.subr.mxu0 0.0
    %1693 = vmatpush1.msra.mxu0 0.0
    %1694 = vmatprep.subr.mxu0 0.0
    %1695 = vmatpush1.msra.mxu0 0.0
    %1696 = vmatprep.subr.mxu0 0.0
    %1697 = vmatpush1.msra.mxu0 0.0
    %1698 = vmatprep.subr.mxu0 0.0
    %1699 = vmatpush1.msra.mxu0 0.0
    %1700 = vmatprep.subr.mxu0 0.0
    %1701 = vmatpush1.msra.mxu0 0.0
    %1702 = vmatprep.subr.mxu0 0.0
    %1703 = vmatpush1.msra.mxu0 0.0
    %1704 = vmatprep.subr.mxu0 0.0
    %1705 = vmatpush1.msra.mxu0 0.0
    %1706 = vmatprep.subr.mxu0 0.0
    %1707 = vmatpush1.msra.mxu0 0.0
    %1708 = vmatprep.subr.mxu0 0.0
    %1709 = vmatpush1.msra.mxu0 0.0
    %1710 = vmatprep.subr.mxu0 0.0
    %1711 = vmatpush1.msra.mxu0 0.0
    %1712 = vmatprep.subr.mxu0 0.0
    %1713 = vmatpush1.msra.mxu0 0.0
    %1714 = vmatprep.subr.mxu0 0.0
    %1715 = vmatpush1.msra.mxu0 0.0
    %1716 = vmatprep.subr.mxu0 0.0
    %1717 = vmatpush1.msra.mxu0 0.0
    %1718 = vmatprep.subr.mxu0 0.0
    %1719 = vmatpush1.msra.mxu0 0.0
    %1720 = vmatprep.subr.mxu0 0.0
    %1721 = vmatpush1.msra.mxu0 0.0
    %1722 = vmatprep.subr.mxu0 0.0
    %1723 = vmatpush1.msra.mxu0 0.0
    %1724 = vmatprep.subr.mxu0 0.0
    %1725 = vmatpush1.msra.mxu0 0.0
    %1726 = vmatprep.subr.mxu0 0.0
    %1727 = vmatpush1.msra.mxu0 0.0
    %1728 = vmatprep.mubr.f32.mxu0 0.0
    %1729 = vmatmul.mubr.f32.gmra.mrb[0].mxu0 %v1662
    %v1730 = vpop.f32.mrb[0].mxu0
    %v1731 = vadd.f32 %v1659, %v1730
    %v1732 = vpop.f32.mrb[0].mxu0
    %1733 = vdwg.mxu0
    %v1734 = vmax.f32 %v1731, 0.0
    %v1735 = vld [vmem:[%s11] sm:$0xff]
    %v1736 = vld [vmem:[%s11 + $0x8] sm:$0xff]
    %v1737 = vld [vmem:[%s11 + $0x10] sm:$0xff]
    %v1738 = vld [vmem:[%s11 + $0x18] sm:$0xff]
    %v1739 = vld [vmem:[%s12] sm:$0x1]
    %v1741 = vlaneseq
    %v1742 = vshrl.u32 %v1741, 7
    %v1743 = vsub.s32 0, %v1742
    %v1744 = vrot.slane %v1739, %v1743
    %vm1746 = vcmask 261120
    %v1748 = vsel %vm1746, %v1734, 0
    %1750 = vmatprep.subr.mxu0 0.0
    %1751 = vmatpush1.msra.mxu0 %v1735
    %1752 = vmatprep.subr.mxu0 0.0
    %1753 = vmatpush1.msra.mxu0 %v1736
    %1754 = vmatprep.subr.mxu0 0.0
    %1755 = vmatpush1.msra.mxu0 %v1737
    %1756 = vmatprep.subr.mxu0 0.0
    %1757 = vmatpush1.msra.mxu0 %v1738
    %1758 = vmatprep.subr.mxu0 0.0
    %1759 = vmatpush1.msra.mxu0 0.0
    %1760 = vmatprep.subr.mxu0 0.0
    %1761 = vmatpush1.msra.mxu0 0.0
    %1762 = vmatprep.subr.mxu0 0.0
    %1763 = vmatpush1.msra.mxu0 0.0
    %1764 = vmatprep.subr.mxu0 0.0
    %1765 = vmatpush1.msra.mxu0 0.0
    %1766 = vmatprep.subr.mxu0 0.0
    %1767 = vmatpush1.msra.mxu0 0.0
    %1768 = vmatprep.subr.mxu0 0.0
    %1769 = vmatpush1.msra.mxu0 0.0
    %1770 = vmatprep.subr.mxu0 0.0
    %1771 = vmatpush1.msra.mxu0 0.0
    %1772 = vmatprep.subr.mxu0 0.0
    %1773 = vmatpush1.msra.mxu0 0.0
    %1774 = vmatprep.subr.mxu0 0.0
    %1775 = vmatpush1.msra.mxu0 0.0
    %1776 = vmatprep.subr.mxu0 0.0
    %1777 = vmatpush1.msra.mxu0 0.0
    %1778 = vmatprep.subr.mxu0 0.0
    %1779 = vmatpush1.msra.mxu0 0.0
    %1780 = vmatprep.subr.mxu0 0.0
    %1781 = vmatpush1.msra.mxu0 0.0
    %1782 = vmatprep.subr.mxu0 0.0
    %1783 = vmatpush1.msra.mxu0 0.0
    %1784 = vmatprep.subr.mxu0 0.0
    %1785 = vmatpush1.msra.mxu0 0.0
    %1786 = vmatprep.subr.mxu0 0.0
    %1787 = vmatpush1.msra.mxu0 0.0
    %1788 = vmatprep.subr.mxu0 0.0
    %1789 = vmatpush1.msra.mxu0 0.0
    %1790 = vmatprep.subr.mxu0 0.0
    %1791 = vmatpush1.msra.mxu0 0.0
    %1792 = vmatprep.subr.mxu0 0.0
    %1793 = vmatpush1.msra.mxu0 0.0
    %1794 = vmatprep.subr.mxu0 0.0
    %1795 = vmatpush1.msra.mxu0 0.0
    %1796 = vmatprep.subr.mxu0 0.0
    %1797 = vmatpush1.msra.mxu0 0.0
    %1798 = vmatprep.subr.mxu0 0.0
    %1799 = vmatpush1.msra.mxu0 0.0
    %1800 = vmatprep.subr.mxu0 0.0
    %1801 = vmatpush1.msra.mxu0 0.0
    %1802 = vmatprep.subr.mxu0 0.0
    %1803 = vmatpush1.msra.mxu0 0.0
    %1804 = vmatprep.subr.mxu0 0.0
    %1805 = vmatpush1.msra.mxu0 0.0
    %1806 = vmatprep.subr.mxu0 0.0
    %1807 = vmatpush1.msra.mxu0 0.0
    %1808 = vmatprep.subr.mxu0 0.0
    %1809 = vmatpush1.msra.mxu0 0.0
    %1810 = vmatprep.subr.mxu0 0.0
    %1811 = vmatpush1.msra.mxu0 0.0
    %1812 = vmatprep.subr.mxu0 0.0
    %1813 = vmatpush1.msra.mxu0 0.0
    %1814 = vmatprep.mubr.f32.mxu0 0.0
    %1815 = vmatmul.mubr.f32.gmra.mrb[0].mxu0 %v1748
    %v1816 = vpop.f32.mrb[0].mxu0
    %v1817 = vadd.f32 %v1744, %v1816
    %v1818 = vpop.f32.mrb[0].mxu0
    %1819 = vdwg.mxu0
    %v1820 = vmax.f32 %v1817, 0.0
    %v1821 = vld [vmem:[%s13] sm:$0xff]
    %v1822 = vld [vmem:[%s13 + $0x8] sm:$0xff]
    %v1823 = vld [vmem:[%s13 + $0x10] sm:$0xff]
    %v1824 = vld [vmem:[%s13 + $0x18] sm:$0xff]
    %v1825 = vld [vmem:[%s13 + $0x20] sm:$0xff]
    %v1826 = vld [vmem:[%s13 + $0x28] sm:$0xff]
    %v1827 = vld [vmem:[%s13 + $0x30] sm:$0xff]
    %v1828 = vld [vmem:[%s13 + $0x38] sm:$0xff]
    %v1829 = vld [vmem:[%s14] sm:$0x3]
    %v1831 = vlaneseq
    %v1832 = vshrl.u32 %v1831, 7
    %v1833 = vsub.s32 0, %v1832
    %v1834 = vrot.slane %v1829, %v1833
    %v1835 = vlaneseq
    %v1836 = vshrl.u32 %v1835, 7
    %v1837 = vsub.s32 1, %v1836
    %v1838 = vrot.slane %v1829, %v1837
    %v1842 = vsel %vm1746, %v1820, 0
    %1844 = vmatprep.subr.mxu0 %v1822
    %1845 = vmatpush1.msra.mxu0 %v1821
    %1846 = vmatprep.subr.mxu0 %v1824
    %1847 = vmatpush1.msra.mxu0 %v1823
    %1848 = vmatprep.subr.mxu0 %v1826
    %1849 = vmatpush1.msra.mxu0 %v1825
    %1850 = vmatprep.subr.mxu0 %v1828
    %1851 = vmatpush1.msra.mxu0 %v1827
    %1852 = vmatprep.subr.mxu0 0.0
    %1853 = vmatpush1.msra.mxu0 0.0
    %1854 = vmatprep.subr.mxu0 0.0
    %1855 = vmatpush1.msra.mxu0 0.0
    %1856 = vmatprep.subr.mxu0 0.0
    %1857 = vmatpush1.msra.mxu0 0.0
    %1858 = vmatprep.subr.mxu0 0.0
    %1859 = vmatpush1.msra.mxu0 0.0
    %1860 = vmatprep.subr.mxu0 0.0
    %1861 = vmatpush1.msra.mxu0 0.0
    %1862 = vmatprep.subr.mxu0 0.0
    %1863 = vmatpush1.msra.mxu0 0.0
    %1864 = vmatprep.subr.mxu0 0.0
    %1865 = vmatpush1.msra.mxu0 0.0
    %1866 = vmatprep.subr.mxu0 0.0
    %1867 = vmatpush1.msra.mxu0 0.0
    %1868 = vmatprep.subr.mxu0 0.0
    %1869 = vmatpush1.msra.mxu0 0.0
    %1870 = vmatprep.subr.mxu0 0.0
    %1871 = vmatpush1.msra.mxu0 0.0
    %1872 = vmatprep.subr.mxu0 0.0
    %1873 = vmatpush1.msra.mxu0 0.0
    %1874 = vmatprep.subr.mxu0 0.0
    %1875 = vmatpush1.msra.mxu0 0.0
    %1876 = vmatprep.subr.mxu0 0.0
    %1877 = vmatpush1.msra.mxu0 0.0
    %1878 = vmatprep.subr.mxu0 0.0
    %1879 = vmatpush1.msra.mxu0 0.0
    %1880 = vmatprep.subr.mxu0 0.0
    %1881 = vmatpush1.msra.mxu0 0.0
    %1882 = vmatprep.subr.mxu0 0.0
    %1883 = vmatpush1.msra.mxu0 0.0
    %1884 = vmatprep.subr.mxu0 0.0
    %1885 = vmatpush1.msra.mxu0 0.0
    %1886 = vmatprep.subr.mxu0 0.0
    %1887 = vmatpush1.msra.mxu0 0.0
    %1888 = vmatprep.subr.mxu0 0.0
    %1889 = vmatpush1.msra.mxu0 0.0
    %1890 = vmatprep.subr.mxu0 0.0
    %1891 = vmatpush1.msra.mxu0 0.0
    %1892 = vmatprep.subr.mxu0 0.0
    %1893 = vmatpush1.msra.mxu0 0.0
    %1894 = vmatprep.subr.mxu0 0.0
    %1895 = vmatpush1.msra.mxu0 0.0
    %1896 = vmatprep.subr.mxu0 0.0
    %1897 = vmatpush1.msra.mxu0 0.0
    %1898 = vmatprep.subr.mxu0 0.0
    %1899 = vmatpush1.msra.mxu0 0.0
    %1900 = vmatprep.subr.mxu0 0.0
    %1901 = vmatpush1.msra.mxu0 0.0
    %1902 = vmatprep.subr.mxu0 0.0
    %1903 = vmatpush1.msra.mxu0 0.0
    %1904 = vmatprep.subr.mxu0 0.0
    %1905 = vmatpush1.msra.mxu0 0.0
    %1906 = vmatprep.subr.mxu0 0.0
    %1907 = vmatpush1.msra.mxu0 0.0
    %1908 = vmatprep.mubr.f32.mxu0 0.0
    %1909 = vmatmul.mubr.f32.gmra.mrb[0].mxu0 %v1842
    %v1910 = vpop.f32.mrb[0].mxu0
    %v1911 = vadd.f32 %v1834, %v1910
    %v1912 = vpop.f32.mrb[0].mxu0
    %v1913 = vadd.f32 %v1838, %v1912
    %1914 = vdwg.mxu0
    %1915 = vst [vmem:[#allocation2] sm:$0xff] %v1911
    %v1916 = vmax.f32 %v1913, -10.0
    %v1917 = vmin.f32 %v1916, 2.0
    %1918 = vst [vmem:[#allocation4] sm:$0xff] %v1917
    // Predicated region
    $region62: #{actor_forward.1} parent=1 // pred_check
      _
    $region63: #{actor_forward.1} parent=1 // pred_check_branch
      %1920 = sbr.rel (0) target = $region65
    $region64: #{actor_forward.1} parent=1 // pred_region
      %s1922 = ssub.s32 128, 32
      %1923 = vsyncadd [#allocation3], %s1922
      %s1924 = sshll.u32 [#allocation2], 4
      %s1925 = int_to_ptr.vmem [resolvable:$true] %s1924
      %1930 = dma.vmem_to_hbm [thread:$0]  %s1925, 32, %s15, [#allocation3], 32, 32, 2
    $region65: #{actor_forward.1} parent=1 // pred_fallthru
      _
    // Predicated region
    $region66: #{actor_forward.1} parent=1 // pred_check
      _
    $region67: #{actor_forward.1} parent=1 // pred_check_branch
      %1932 = sbr.rel (0) target = $region69
    $region68: #{actor_forward.1} parent=1 // pred_region
      %s1934 = ssub.s32 128, 32
      %1935 = vsyncadd [#allocation5], %s1934
      %s1936 = sshll.u32 [#allocation4], 4
      %s1937 = int_to_ptr.vmem [resolvable:$true] %s1936
      %1942 = dma.vmem_to_hbm [thread:$0]  %s1937, 32, %s16, [#allocation5], 32, 32, 2
    $region69: #{actor_forward.1} parent=1 // pred_fallthru
      _
    // Predicated region
    $region70: #{actor_forward.1} parent=1 // pred_check
      _
    $region71: #{actor_forward.1} parent=1 // pred_check_branch
      %1944 = sbr.rel (0) target = $region73
    $region72: #{actor_forward.1} parent=1 // pred_region
      %1945 = dma.done [#allocation3], 128
    $region73: #{actor_forward.1} parent=1 // pred_fallthru
      _
    // Predicated region
    $region74: #{actor_forward.1} parent=1 // pred_check
      _
    $region75: #{actor_forward.1} parent=1 // pred_check_branch
      %1947 = sbr.rel (0) target = $region77
    $region76: #{actor_forward.1} parent=1 // pred_region
      %1948 = dma.done [#allocation5], 128
    $region77: #{actor_forward.1} parent=1 // pred_fallthru
      _
    %1949 = vsyncpa [#allocation3], 1
    %1950 = vsyncpa [#allocation5], 1

</llo_original>
